<compile_context>
chip_gen: v5e
topology: v5e:2x2
jax: 0.10.0
libtpu: 0.0.40
codegen_flags: <defaults>
</compile_context>

<pallas_src>
import jax
import jax.numpy as jnp
from jax import lax
from jax.experimental import pallas as pl
from jax.experimental.pallas import tpu as pltpu

# ----------------------------- config (small) -----------------------------
BATCH = 2
SEQ = 8
HIDDEN = 32
N_HEADS = 4
HEAD_DIM = HIDDEN // N_HEADS
INTERMEDIATE = 64
N_LAYERS = 2
VOCAB = 128
TYPE_VOCAB = 2
MAX_POS = 64
LN_EPS = 1e-12

ROWS = BATCH * SEQ          # token-major rows
QA_PAD = 128                # lane-dense padded width for the 2-logit QA head


# ----------------------------- fused kernel -----------------------------
def _layernorm(x, g, b):
    mu = jnp.mean(x, axis=-1, keepdims=True)
    xc = x - mu
    var = jnp.mean(xc * xc, axis=-1, keepdims=True)
    inv = lax.rsqrt(var + LN_EPS)
    return xc * inv * g + b


def _encoder_kernel(
    # activations / mask (full arrays, VMEM-resident)
    emb_ref, maskb_ref, emb_ln_g_ref, emb_ln_b_ref,
    # per-layer weights, stacked along a leading layer axis
    wqkv_ref, bqkv_ref, wo_ref, bo_ref, ln1_g_ref, ln1_b_ref,
    w1_ref, b1_ref, w2_ref, b2_ref, ln2_g_ref, ln2_b_ref,
    # QA head (lane-padded)
    qa_w_ref, qa_b_ref,
    # output
    out_ref,
):
    # ---- embedding LayerNorm ----
    x = _layernorm(emb_ref[...], emb_ln_g_ref[...], emb_ln_b_ref[...])   # [ROWS, HIDDEN] f32

    mask_b = maskb_ref[...]                                              # [BATCH, SEQ] additive bias

    # ---- statically-unrolled encoder layers (weights all resident in VMEM) ----
    for li in range(N_LAYERS):
        # fused QKV projection: one MXU op, 3*HIDDEN output lanes.
        # (1/sqrt(HEAD_DIM) is pre-folded into the Q columns at pack time.)
        qkv = jnp.dot(x, wqkv_ref[li], preferred_element_type=jnp.float32) + bqkv_ref[li]
        q = qkv[:, 0:HIDDEN]
        k = qkv[:, HIDDEN:2 * HIDDEN]
        v = qkv[:, 2 * HIDDEN:3 * HIDDEN]

        # ---- head-batched attention (per batch), contexts kept as values ----
        ctx_rows = []
        for b in range(BATCH):
            rows = slice(b * SEQ, (b + 1) * SEQ)
            q3 = jnp.stack([q[rows, h * HEAD_DIM:(h + 1) * HEAD_DIM]
                            for h in range(N_HEADS)], axis=0)            # [H, S, D]
            k3 = jnp.stack([k[rows, h * HEAD_DIM:(h + 1) * HEAD_DIM]
                            for h in range(N_HEADS)], axis=0)
            v3 = jnp.stack([v[rows, h * HEAD_DIM:(h + 1) * HEAD_DIM]
                            for h in range(N_HEADS)], axis=0)
            mb = mask_b[b:b + 1, :].reshape(1, 1, SEQ)                   # broadcast over heads/rows

            # scores: transposed contraction (no explicit .T), head batch dim
            s = jnp.einsum('hqd,hkd->hqk', q3, k3,
                           preferred_element_type=jnp.float32) + mb      # [H, S, S]
            s = s - jnp.max(s, axis=-1, keepdims=True)
            p = jnp.exp(s)
            p = p * pl.reciprocal(jnp.sum(p, axis=-1, keepdims=True), approx=True)
            ctx3 = jnp.einsum('hqk,hkd->hqd', p, v3,
                              preferred_element_type=jnp.float32)        # [H, S, D]
            # merge heads along the lane axis (value concat, no masked stores)
            ctx_rows.append(jnp.concatenate([ctx3[h] for h in range(N_HEADS)], axis=1))
        ctx = jnp.concatenate(ctx_rows, axis=0)                          # [ROWS, HIDDEN]

        # ---- output projection + residual + LayerNorm (fused epilogue) ----
        attn = jnp.dot(ctx, wo_ref[li], preferred_element_type=jnp.float32) + bo_ref[li]
        x = _layernorm(x + attn, ln1_g_ref[li], ln1_b_ref[li])

        # ---- FFN (GELU) + residual + LayerNorm (fused epilogue) ----
        # TODO(synk): HF BERT default 'gelu' is the exact erf form; tanh approx used here.
        h1 = jnp.dot(x, w1_ref[li], preferred_element_type=jnp.float32) + b1_ref[li]
        h1 = jax.nn.gelu(h1, approximate=True)
        h2 = jnp.dot(h1, w2_ref[li], preferred_element_type=jnp.float32) + b2_ref[li]
        x = _layernorm(x + h2, ln2_g_ref[li], ln2_b_ref[li])

    # ---- QA head (lane-dense padded output, unmasked vst) ----
    logits = jnp.dot(x, qa_w_ref[...], preferred_element_type=jnp.float32) + qa_b_ref[...]
    out_ref[...] = logits.astype(out_ref.dtype)


def fused_encoder(emb, mask_bias, packed):
    """Runs embeddings-LN + all encoder layers + QA head in one pallas_call."""

    def full_spec(shape):
        return pl.BlockSpec(shape, lambda i, _s=shape: (0,) * len(_s))

    in_specs = [
        full_spec((ROWS, HIDDEN)),                       # emb
        full_spec((BATCH, SEQ)),                         # mask bias
        full_spec((1, HIDDEN)),                          # emb_ln_g
        full_spec((1, HIDDEN)),                          # emb_ln_b
        full_spec((N_LAYERS, HIDDEN, 3 * HIDDEN)),       # wqkv
        full_spec((N_LAYERS, 1, 3 * HIDDEN)),            # bqkv
        full_spec((N_LAYERS, HIDDEN, HIDDEN)),           # wo
        full_spec((N_LAYERS, 1, HIDDEN)),                # bo
        full_spec((N_LAYERS, 1, HIDDEN)),                # ln1_g
        full_spec((N_LAYERS, 1, HIDDEN)),                # ln1_b
        full_spec((N_LAYERS, HIDDEN, INTERMEDIATE)),     # w1
        full_spec((N_LAYERS, 1, INTERMEDIATE)),          # b1
        full_spec((N_LAYERS, INTERMEDIATE, HIDDEN)),     # w2
        full_spec((N_LAYERS, 1, HIDDEN)),                # b2
        full_spec((N_LAYERS, 1, HIDDEN)),                # ln2_g
        full_spec((N_LAYERS, 1, HIDDEN)),                # ln2_b
        full_spec((HIDDEN, QA_PAD)),                     # qa_w (padded)
        full_spec((1, QA_PAD)),                          # qa_b (padded)
    ]

    return pl.pallas_call(
        _encoder_kernel,
        out_shape=jax.ShapeDtypeStruct((ROWS, QA_PAD), jnp.float32),
        grid=(1,),
        in_specs=in_specs,
        out_specs=pl.BlockSpec((ROWS, QA_PAD), lambda i: (0, 0)),
        compiler_params=pltpu.CompilerParams(
            dimension_semantics=("arbitrary",)),
    )(
        emb, mask_bias,
        packed["emb_ln_g"], packed["emb_ln_b"],
        packed["wqkv"], packed["bqkv"], packed["wo"], packed["bo"],
        packed["ln1_g"], packed["ln1_b"],
        packed["w1"], packed["b1"], packed["w2"], packed["b2"],
        packed["ln2_g"], packed["ln2_b"],
        packed["qa_w"], packed["qa_b"],
    )


# ----------------------------- parameter init -----------------------------
def init_params(key):
    def dense(k, fan_in, fan_out):
        kw, = jax.random.split(k, 1)
        w = jax.random.normal(kw, (fan_in, fan_out), jnp.float32) * 0.02
        b = jnp.zeros((fan_out,), jnp.float32)
        return w, b

    keys = jax.random.split(key, 4 + N_LAYERS)
    params = {
        "word_emb": jax.random.normal(keys[0], (VOCAB, HIDDEN), jnp.float32) * 0.02,
        "pos_emb": jax.random.normal(keys[1], (MAX_POS, HIDDEN), jnp.float32) * 0.02,
        "type_emb": jax.random.normal(keys[2], (TYPE_VOCAB, HIDDEN), jnp.float32) * 0.02,
        "emb_ln_g": jnp.ones((HIDDEN,), jnp.float32),
        "emb_ln_b": jnp.zeros((HIDDEN,), jnp.float32),
        "layers": [],
    }
    for li in range(N_LAYERS):
        lk = jax.random.split(keys[4 + li], 6)
        wq, bq = dense(lk[0], HIDDEN, HIDDEN)
        wk, bk = dense(lk[1], HIDDEN, HIDDEN)
        wv, bv = dense(lk[2], HIDDEN, HIDDEN)
        wo, bo = dense(lk[3], HIDDEN, HIDDEN)
        w1, b1 = dense(lk[4], HIDDEN, INTERMEDIATE)
        w2, b2 = dense(lk[5], INTERMEDIATE, HIDDEN)
        params["layers"].append({
            "wq": wq, "bq": bq, "wk": wk, "bk": bk, "wv": wv, "bv": bv,
            "wo": wo, "bo": bo,
            "ln1_g": jnp.ones((HIDDEN,), jnp.float32), "ln1_b": jnp.zeros((HIDDEN,), jnp.float32),
            "w1": w1, "b1": b1, "w2": w2, "b2": b2,
            "ln2_g": jnp.ones((HIDDEN,), jnp.float32), "ln2_b": jnp.zeros((HIDDEN,), jnp.float32),
        })
    wqa, bqa = dense(keys[3], HIDDEN, 2)
    params["qa_w"] = wqa
    params["qa_b"] = bqa
    return params


def pack_params(params):
    """Pack per-layer weights into stacked arrays consumed by the fused kernel.

    The 1/sqrt(HEAD_DIM) attention scale is folded into the Q projection here
    (host-side, one-time) so the kernel does no per-layer scaling.
    """
    layers = params["layers"]
    scale = 1.0 / float(HEAD_DIM) ** 0.5
    packed = {
        "word_emb": params["word_emb"],
        "pos_emb": params["pos_emb"],
        "type_emb": params["type_emb"],
        "emb_ln_g": params["emb_ln_g"].reshape(1, HIDDEN),
        "emb_ln_b": params["emb_ln_b"].reshape(1, HIDDEN),
        # fused QKV weights/biases: [L, H, 3H] / [L, 1, 3H], Q columns pre-scaled
        "wqkv": jnp.stack([jnp.concatenate([lp["wq"] * scale, lp["wk"], lp["wv"]], axis=1)
                           for lp in layers]),
        "bqkv": jnp.stack([jnp.concatenate([lp["bq"] * scale, lp["bk"], lp["bv"]])[None, :]
                           for lp in layers]),
        "wo": jnp.stack([lp["wo"] for lp in layers]),
        "bo": jnp.stack([lp["bo"][None, :] for lp in layers]),
        "ln1_g": jnp.stack([lp["ln1_g"][None, :] for lp in layers]),
        "ln1_b": jnp.stack([lp["ln1_b"][None, :] for lp in layers]),
        "w1": jnp.stack([lp["w1"] for lp in layers]),
        "b1": jnp.stack([lp["b1"][None, :] for lp in layers]),
        "w2": jnp.stack([lp["w2"] for lp in layers]),
        "b2": jnp.stack([lp["b2"][None, :] for lp in layers]),
        "ln2_g": jnp.stack([lp["ln2_g"][None, :] for lp in layers]),
        "ln2_b": jnp.stack([lp["ln2_b"][None, :] for lp in layers]),
        # QA head zero-padded to a lane-dense 128-wide output
        "qa_w": jnp.zeros((HIDDEN, QA_PAD), jnp.float32).at[:, :2].set(params["qa_w"]),
        "qa_b": jnp.zeros((1, QA_PAD), jnp.float32).at[0, :2].set(params["qa_b"]),
    }
    return packed


# ----------------------------- model forward -----------------------------
def qa_forward(packed, input_ids, token_type_ids, attention_mask):
    """Returns (start_logits, end_logits), each [B, S]."""
    b, s = input_ids.shape
    positions = jnp.arange(s, dtype=jnp.int32)

    # Embedding gather is glue (plain JAX); all hot-path compute is in the fused kernel.
    emb = (jnp.take(packed["word_emb"], input_ids, axis=0)
           + jnp.take(packed["pos_emb"], positions, axis=0)[None, :, :]
           + jnp.take(packed["type_emb"], token_type_ids, axis=0))
    emb = emb.reshape(b * s, HIDDEN)

    # additive attention mask bias [B, S]; broadcast over heads happens in-kernel.
    mask_bias = (1.0 - attention_mask.astype(jnp.float32)) * -1e9

    logits_pad = fused_encoder(emb, mask_bias, packed)      # [B*S, 128]
    logits = logits_pad[:, :2].reshape(b, s, 2)
    return logits[:, :, 0], logits[:, :, 1]


# ----------------------------- driver -----------------------------
if __name__ == "__main__":
    key = jax.random.PRNGKey(0)
    pkey, ikey = jax.random.split(key)

    params = init_params(pkey)
    packed = pack_params(params)

    # batch dict analogous to HF tokenizer output
    input_ids = jax.random.randint(ikey, (BATCH, SEQ), 0, VOCAB, dtype=jnp.int32)
    token_type_ids = jnp.zeros((BATCH, SEQ), jnp.int32)
    attention_mask = jnp.ones((BATCH, SEQ), jnp.int32)

    fwd = jax.jit(qa_forward)
    start_logits, end_logits = fwd(packed, input_ids, token_type_ids, attention_mask)
    jax.block_until_ready((start_logits, end_logits))

    assert start_logits.shape == (BATCH, SEQ)
    assert end_logits.shape == (BATCH, SEQ)
    assert jnp.all(jnp.isfinite(start_logits)) and jnp.all(jnp.isfinite(end_logits))
    print("KERNEL_OK")
</pallas_src>

<mosaic_0001>
module attributes {stable_mosaic.version = 11 : i64} {
  func.func @_encoder_kernel(%arg0: i32, %arg1: memref<16x32xf32, #tpu.memory_space<vmem>>, %arg2: memref<2x8xf32, #tpu.memory_space<vmem>>, %arg3: memref<1x32xf32, #tpu.memory_space<vmem>>, %arg4: memref<1x32xf32, #tpu.memory_space<vmem>>, %arg5: memref<2x32x96xf32, #tpu.memory_space<vmem>>, %arg6: memref<2x1x96xf32, #tpu.memory_space<vmem>>, %arg7: memref<2x32x32xf32, #tpu.memory_space<vmem>>, %arg8: memref<2x1x32xf32, #tpu.memory_space<vmem>>, %arg9: memref<2x1x32xf32, #tpu.memory_space<vmem>>, %arg10: memref<2x1x32xf32, #tpu.memory_space<vmem>>, %arg11: memref<2x32x64xf32, #tpu.memory_space<vmem>>, %arg12: memref<2x1x64xf32, #tpu.memory_space<vmem>>, %arg13: memref<2x64x32xf32, #tpu.memory_space<vmem>>, %arg14: memref<2x1x32xf32, #tpu.memory_space<vmem>>, %arg15: memref<2x1x32xf32, #tpu.memory_space<vmem>>, %arg16: memref<2x1x32xf32, #tpu.memory_space<vmem>>, %arg17: memref<32x128xf32, #tpu.memory_space<vmem>>, %arg18: memref<1x128xf32, #tpu.memory_space<vmem>>, %arg19: memref<16x128xf32, #tpu.memory_space<vmem>>) attributes {dimension_semantics = [#tpu.dimension_semantics<arbitrary>], iteration_bounds = array<i64: 1>, scalar_prefetch = 0 : i64, scratch_operands = 0 : i64, tpu.core_type = #tpu.core_type<tc>, window_params = [{pipeline_mode = #tpu.pipeline_mode<synchronous>, transform_indices = @transform_0, window_bounds = array<i64: 16, 32>}, {pipeline_mode = #tpu.pipeline_mode<synchronous>, transform_indices = @transform_1, window_bounds = array<i64: 2, 8>}, {pipeline_mode = #tpu.pipeline_mode<synchronous>, transform_indices = @transform_2, window_bounds = array<i64: 1, 32>}, {pipeline_mode = #tpu.pipeline_mode<synchronous>, transform_indices = @transform_3, window_bounds = array<i64: 1, 32>}, {pipeline_mode = #tpu.pipeline_mode<synchronous>, transform_indices = @transform_4, window_bounds = array<i64: 2, 32, 96>}, {pipeline_mode = #tpu.pipeline_mode<synchronous>, transform_indices = @transform_5, window_bounds = array<i64: 2, 1, 96>}, {pipeline_mode = #tpu.pipeline_mode<synchronous>, transform_indices = @transform_6, window_bounds = array<i64: 2, 32, 32>}, {pipeline_mode = #tpu.pipeline_mode<synchronous>, transform_indices = @transform_7, window_bounds = array<i64: 2, 1, 32>}, {pipeline_mode = #tpu.pipeline_mode<synchronous>, transform_indices = @transform_8, window_bounds = array<i64: 2, 1, 32>}, {pipeline_mode = #tpu.pipeline_mode<synchronous>, transform_indices = @transform_9, window_bounds = array<i64: 2, 1, 32>}, {pipeline_mode = #tpu.pipeline_mode<synchronous>, transform_indices = @transform_10, window_bounds = array<i64: 2, 32, 64>}, {pipeline_mode = #tpu.pipeline_mode<synchronous>, transform_indices = @transform_11, window_bounds = array<i64: 2, 1, 64>}, {pipeline_mode = #tpu.pipeline_mode<synchronous>, transform_indices = @transform_12, window_bounds = array<i64: 2, 64, 32>}, {pipeline_mode = #tpu.pipeline_mode<synchronous>, transform_indices = @transform_13, window_bounds = array<i64: 2, 1, 32>}, {pipeline_mode = #tpu.pipeline_mode<synchronous>, transform_indices = @transform_14, window_bounds = array<i64: 2, 1, 32>}, {pipeline_mode = #tpu.pipeline_mode<synchronous>, transform_indices = @transform_15, window_bounds = array<i64: 2, 1, 32>}, {pipeline_mode = #tpu.pipeline_mode<synchronous>, transform_indices = @transform_16, window_bounds = array<i64: 32, 128>}, {pipeline_mode = #tpu.pipeline_mode<synchronous>, transform_indices = @transform_17, window_bounds = array<i64: 1, 128>}, {pipeline_mode = #tpu.pipeline_mode<synchronous>, transform_indices = @transform_18, window_bounds = array<i64: 16, 128>}]} {
    %c0 = arith.constant 0 : index
    %c0_0 = arith.constant 0 : index
    %0 = vector.load %arg1[%c0, %c0_0] : memref<16x32xf32, #tpu.memory_space<vmem>>, vector<16x32xf32>
    %c0_1 = arith.constant 0 : index
    %c0_2 = arith.constant 0 : index
    %1 = vector.load %arg3[%c0_1, %c0_2] : memref<1x32xf32, #tpu.memory_space<vmem>>, vector<1x32xf32>
    %c0_3 = arith.constant 0 : index
    %c0_4 = arith.constant 0 : index
    %2 = vector.load %arg4[%c0_3, %c0_4] : memref<1x32xf32, #tpu.memory_space<vmem>>, vector<1x32xf32>
    %cst = arith.constant dense<0.000000e+00> : vector<16xf32>
    %3 = vector.multi_reduction <add>, %0, %cst [1] : vector<16x32xf32> to vector<16xf32>
    %4 = vector.shape_cast %3 : vector<16xf32> to vector<16x1xf32>
    %cst_5 = arith.constant 3.200000e+01 : f32
    %5 = vector.broadcast %cst_5 : f32 to vector<16x1xf32>
    %6 = arith.divf %4, %5 : vector<16x1xf32>
    %7 = vector.broadcast %6 : vector<16x1xf32> to vector<16x32xf32>
    %8 = arith.subf %0, %7 : vector<16x32xf32>
    %9 = arith.mulf %8, %8 : vector<16x32xf32>
    %cst_6 = arith.constant dense<0.000000e+00> : vector<16xf32>
    %10 = vector.multi_reduction <add>, %9, %cst_6 [1] : vector<16x32xf32> to vector<16xf32>
    %11 = vector.shape_cast %10 : vector<16xf32> to vector<16x1xf32>
    %cst_7 = arith.constant 3.200000e+01 : f32
    %12 = vector.broadcast %cst_7 : f32 to vector<16x1xf32>
    %13 = arith.divf %11, %12 : vector<16x1xf32>
    %cst_8 = arith.constant 9.99999996E-13 : f32
    %14 = vector.broadcast %cst_8 : f32 to vector<16x1xf32>
    %15 = arith.addf %13, %14 : vector<16x1xf32>
    %16 = math.rsqrt %15 : vector<16x1xf32>
    %17 = vector.broadcast %16 : vector<16x1xf32> to vector<16x32xf32>
    %18 = arith.mulf %8, %17 : vector<16x32xf32>
    %19 = vector.broadcast %1 : vector<1x32xf32> to vector<16x32xf32>
    %20 = arith.mulf %18, %19 : vector<16x32xf32>
    %21 = vector.broadcast %2 : vector<1x32xf32> to vector<16x32xf32>
    %22 = arith.addf %20, %21 : vector<16x32xf32>
    %c0_9 = arith.constant 0 : index
    %c0_10 = arith.constant 0 : index
    %23 = vector.load %arg2[%c0_9, %c0_10] : memref<2x8xf32, #tpu.memory_space<vmem>>, vector<2x8xf32>
    %c0_11 = arith.constant 0 : index
    %c0_12 = arith.constant 0 : index
    %c0_13 = arith.constant 0 : index
    %24 = vector.load %arg5[%c0_11, %c0_12, %c0_13] : memref<2x32x96xf32, #tpu.memory_space<vmem>>, vector<1x32x96xf32>
    %25 = vector.shape_cast %24 : vector<1x32x96xf32> to vector<32x96xf32>
    %cst_14 = arith.constant dense<0.000000e+00> : vector<16x96xf32>
    %26 = tpu.matmul %22, %25, %cst_14 {dimension_numbers = #tpu.dot_dimension_numbers<[1], [0], [0], [1], [0, 0, 1, 1], [], []>} : vector<16x32xf32>, vector<32x96xf32>, vector<16x96xf32> -> vector<16x96xf32>
    %c0_15 = arith.constant 0 : index
    %c0_16 = arith.constant 0 : index
    %c0_17 = arith.constant 0 : index
    %27 = vector.load %arg6[%c0_15, %c0_16, %c0_17] : memref<2x1x96xf32, #tpu.memory_space<vmem>>, vector<1x1x96xf32>
    %28 = vector.shape_cast %27 : vector<1x1x96xf32> to vector<1x96xf32>
    %29 = vector.broadcast %28 : vector<1x96xf32> to vector<16x96xf32>
    %30 = arith.addf %26, %29 : vector<16x96xf32>
    %31 = vector.extract_strided_slice %30 {offsets = [0, 0], sizes = [16, 32], strides = [1, 1]} : vector<16x96xf32> to vector<16x32xf32>
    %32 = vector.extract_strided_slice %30 {offsets = [0, 32], sizes = [16, 32], strides = [1, 1]} : vector<16x96xf32> to vector<16x32xf32>
    %33 = vector.extract_strided_slice %30 {offsets = [0, 64], sizes = [16, 32], strides = [1, 1]} : vector<16x96xf32> to vector<16x32xf32>
    %34 = vector.extract_strided_slice %31 {offsets = [0, 0], sizes = [8, 8], strides = [1, 1]} : vector<16x32xf32> to vector<8x8xf32>
    %35 = vector.extract_strided_slice %31 {offsets = [0, 8], sizes = [8, 8], strides = [1, 1]} : vector<16x32xf32> to vector<8x8xf32>
    %36 = vector.extract_strided_slice %31 {offsets = [0, 16], sizes = [8, 8], strides = [1, 1]} : vector<16x32xf32> to vector<8x8xf32>
    %37 = vector.extract_strided_slice %31 {offsets = [0, 24], sizes = [8, 8], strides = [1, 1]} : vector<16x32xf32> to vector<8x8xf32>
    %38 = vector.shape_cast %34 : vector<8x8xf32> to vector<1x8x8xf32>
    %39 = vector.shape_cast %35 : vector<8x8xf32> to vector<1x8x8xf32>
    %40 = vector.shape_cast %36 : vector<8x8xf32> to vector<1x8x8xf32>
    %41 = vector.shape_cast %37 : vector<8x8xf32> to vector<1x8x8xf32>
    %42 = tpu.concatenate %38, %39, %40, %41 in 0 : vector<1x8x8xf32>, vector<1x8x8xf32>, vector<1x8x8xf32>, vector<1x8x8xf32> -> vector<4x8x8xf32>
    %43 = vector.extract_strided_slice %32 {offsets = [0, 0], sizes = [8, 8], strides = [1, 1]} : vector<16x32xf32> to vector<8x8xf32>
    %44 = vector.extract_strided_slice %32 {offsets = [0, 8], sizes = [8, 8], strides = [1, 1]} : vector<16x32xf32> to vector<8x8xf32>
    %45 = vector.extract_strided_slice %32 {offsets = [0, 16], sizes = [8, 8], strides = [1, 1]} : vector<16x32xf32> to vector<8x8xf32>
    %46 = vector.extract_strided_slice %32 {offsets = [0, 24], sizes = [8, 8], strides = [1, 1]} : vector<16x32xf32> to vector<8x8xf32>
    %47 = vector.shape_cast %43 : vector<8x8xf32> to vector<1x8x8xf32>
    %48 = vector.shape_cast %44 : vector<8x8xf32> to vector<1x8x8xf32>
    %49 = vector.shape_cast %45 : vector<8x8xf32> to vector<1x8x8xf32>
    %50 = vector.shape_cast %46 : vector<8x8xf32> to vector<1x8x8xf32>
    %51 = tpu.concatenate %47, %48, %49, %50 in 0 : vector<1x8x8xf32>, vector<1x8x8xf32>, vector<1x8x8xf32>, vector<1x8x8xf32> -> vector<4x8x8xf32>
    %52 = vector.extract_strided_slice %33 {offsets = [0, 0], sizes = [8, 8], strides = [1, 1]} : vector<16x32xf32> to vector<8x8xf32>
    %53 = vector.extract_strided_slice %33 {offsets = [0, 8], sizes = [8, 8], strides = [1, 1]} : vector<16x32xf32> to vector<8x8xf32>
    %54 = vector.extract_strided_slice %33 {offsets = [0, 16], sizes = [8, 8], strides = [1, 1]} : vector<16x32xf32> to vector<8x8xf32>
    %55 = vector.extract_strided_slice %33 {offsets = [0, 24], sizes = [8, 8], strides = [1, 1]} : vector<16x32xf32> to vector<8x8xf32>
    %56 = vector.shape_cast %52 : vector<8x8xf32> to vector<1x8x8xf32>
    %57 = vector.shape_cast %53 : vector<8x8xf32> to vector<1x8x8xf32>
    %58 = vector.shape_cast %54 : vector<8x8xf32> to vector<1x8x8xf32>
    %59 = vector.shape_cast %55 : vector<8x8xf32> to vector<1x8x8xf32>
    %60 = tpu.concatenate %56, %57, %58, %59 in 0 : vector<1x8x8xf32>, vector<1x8x8xf32>, vector<1x8x8xf32>, vector<1x8x8xf32> -> vector<4x8x8xf32>
    %61 = vector.extract_strided_slice %23 {offsets = [0, 0], sizes = [1, 8], strides = [1, 1]} : vector<2x8xf32> to vector<1x8xf32>
    %62 = vector.shape_cast %61 : vector<1x8xf32> to vector<1x1x8xf32>
    "tpu.trace_start"() <{level = 10 : i32, message = "hqd,hkd->hqk"}> : () -> ()
    %cst_18 = arith.constant dense<0.000000e+00> : vector<4x8x8xf32>
    %63 = tpu.matmul %42, %51, %cst_18 {dimension_numbers = #tpu.dot_dimension_numbers<[2], [2], [1], [1], [0, 0, 0, 1, 1, 1], [0], [0]>} : vector<4x8x8xf32>, vector<4x8x8xf32>, vector<4x8x8xf32> -> vector<4x8x8xf32>
    "tpu.trace_stop"() : () -> ()
    %64 = vector.broadcast %62 : vector<1x1x8xf32> to vector<4x8x8xf32>
    %65 = arith.addf %63, %64 : vector<4x8x8xf32>
    %cst_19 = arith.constant dense<0xFF800000> : vector<4x8xf32>
    %66 = vector.multi_reduction <maximumf>, %65, %cst_19 [2] : vector<4x8x8xf32> to vector<4x8xf32>
    %67 = vector.shape_cast %66 : vector<4x8xf32> to vector<4x8x1xf32>
    %68 = vector.broadcast %67 : vector<4x8x1xf32> to vector<4x8x8xf32>
    %69 = arith.subf %65, %68 : vector<4x8x8xf32>
    %70 = math.exp %69 : vector<4x8x8xf32>
    %cst_20 = arith.constant dense<0.000000e+00> : vector<4x8xf32>
    %71 = vector.multi_reduction <add>, %70, %cst_20 [2] : vector<4x8x8xf32> to vector<4x8xf32>
    %72 = vector.shape_cast %71 : vector<4x8xf32> to vector<4x8x1xf32>
    %73 = tpu.reciprocal %72 {approx = true} : vector<4x8x1xf32> -> vector<4x8x1xf32>
    %74 = vector.broadcast %73 : vector<4x8x1xf32> to vector<4x8x8xf32>
    %75 = arith.mulf %70, %74 : vector<4x8x8xf32>
    "tpu.trace_start"() <{level = 10 : i32, message = "hqk,hkd->hqd"}> : () -> ()
    %cst_21 = arith.constant dense<0.000000e+00> : vector<4x8x8xf32>
    %76 = tpu.matmul %75, %60, %cst_21 {dimension_numbers = #tpu.dot_dimension_numbers<[2], [1], [1], [2], [0, 0, 0, 1, 1, 2], [0], [0]>} : vector<4x8x8xf32>, vector<4x8x8xf32>, vector<4x8x8xf32> -> vector<4x8x8xf32>
    "tpu.trace_stop"() : () -> ()
    %77 = vector.extract_strided_slice %76 {offsets = [0, 0, 0], sizes = [1, 8, 8], strides = [1, 1, 1]} : vector<4x8x8xf32> to vector<1x8x8xf32>
    %78 = vector.shape_cast %77 : vector<1x8x8xf32> to vector<8x8xf32>
    %79 = vector.extract_strided_slice %76 {offsets = [1, 0, 0], sizes = [1, 8, 8], strides = [1, 1, 1]} : vector<4x8x8xf32> to vector<1x8x8xf32>
    %80 = vector.shape_cast %79 : vector<1x8x8xf32> to vector<8x8xf32>
    %81 = vector.extract_strided_slice %76 {offsets = [2, 0, 0], sizes = [1, 8, 8], strides = [1, 1, 1]} : vector<4x8x8xf32> to vector<1x8x8xf32>
    %82 = vector.shape_cast %81 : vector<1x8x8xf32> to vector<8x8xf32>
    %83 = vector.extract_strided_slice %76 {offsets = [3, 0, 0], sizes = [1, 8, 8], strides = [1, 1, 1]} : vector<4x8x8xf32> to vector<1x8x8xf32>
    %84 = vector.shape_cast %83 : vector<1x8x8xf32> to vector<8x8xf32>
    %85 = tpu.concatenate %78, %80, %82, %84 in 1 : vector<8x8xf32>, vector<8x8xf32>, vector<8x8xf32>, vector<8x8xf32> -> vector<8x32xf32>
    %86 = vector.extract_strided_slice %31 {offsets = [8, 0], sizes = [8, 8], strides = [1, 1]} : vector<16x32xf32> to vector<8x8xf32>
    %87 = vector.extract_strided_slice %31 {offsets = [8, 8], sizes = [8, 8], strides = [1, 1]} : vector<16x32xf32> to vector<8x8xf32>
    %88 = vector.extract_strided_slice %31 {offsets = [8, 16], sizes = [8, 8], strides = [1, 1]} : vector<16x32xf32> to vector<8x8xf32>
    %89 = vector.extract_strided_slice %31 {offsets = [8, 24], sizes = [8, 8], strides = [1, 1]} : vector<16x32xf32> to vector<8x8xf32>
    %90 = vector.shape_cast %86 : vector<8x8xf32> to vector<1x8x8xf32>
    %91 = vector.shape_cast %87 : vector<8x8xf32> to vector<1x8x8xf32>
    %92 = vector.shape_cast %88 : vector<8x8xf32> to vector<1x8x8xf32>
    %93 = vector.shape_cast %89 : vector<8x8xf32> to vector<1x8x8xf32>
    %94 = tpu.concatenate %90, %91, %92, %93 in 0 : vector<1x8x8xf32>, vector<1x8x8xf32>, vector<1x8x8xf32>, vector<1x8x8xf32> -> vector<4x8x8xf32>
    %95 = vector.extract_strided_slice %32 {offsets = [8, 0], sizes = [8, 8], strides = [1, 1]} : vector<16x32xf32> to vector<8x8xf32>
    %96 = vector.extract_strided_slice %32 {offsets = [8, 8], sizes = [8, 8], strides = [1, 1]} : vector<16x32xf32> to vector<8x8xf32>
    %97 = vector.extract_strided_slice %32 {offsets = [8, 16], sizes = [8, 8], strides = [1, 1]} : vector<16x32xf32> to vector<8x8xf32>
    %98 = vector.extract_strided_slice %32 {offsets = [8, 24], sizes = [8, 8], strides = [1, 1]} : vector<16x32xf32> to vector<8x8xf32>
    %99 = vector.shape_cast %95 : vector<8x8xf32> to vector<1x8x8xf32>
    %100 = vector.shape_cast %96 : vector<8x8xf32> to vector<1x8x8xf32>
    %101 = vector.shape_cast %97 : vector<8x8xf32> to vector<1x8x8xf32>
    %102 = vector.shape_cast %98 : vector<8x8xf32> to vector<1x8x8xf32>
    %103 = tpu.concatenate %99, %100, %101, %102 in 0 : vector<1x8x8xf32>, vector<1x8x8xf32>, vector<1x8x8xf32>, vector<1x8x8xf32> -> vector<4x8x8xf32>
    %104 = vector.extract_strided_slice %33 {offsets = [8, 0], sizes = [8, 8], strides = [1, 1]} : vector<16x32xf32> to vector<8x8xf32>
    %105 = vector.extract_strided_slice %33 {offsets = [8, 8], sizes = [8, 8], strides = [1, 1]} : vector<16x32xf32> to vector<8x8xf32>
    %106 = vector.extract_strided_slice %33 {offsets = [8, 16], sizes = [8, 8], strides = [1, 1]} : vector<16x32xf32> to vector<8x8xf32>
    %107 = vector.extract_strided_slice %33 {offsets = [8, 24], sizes = [8, 8], strides = [1, 1]} : vector<16x32xf32> to vector<8x8xf32>
    %108 = vector.shape_cast %104 : vector<8x8xf32> to vector<1x8x8xf32>
    %109 = vector.shape_cast %105 : vector<8x8xf32> to vector<1x8x8xf32>
    %110 = vector.shape_cast %106 : vector<8x8xf32> to vector<1x8x8xf32>
    %111 = vector.shape_cast %107 : vector<8x8xf32> to vector<1x8x8xf32>
    %112 = tpu.concatenate %108, %109, %110, %111 in 0 : vector<1x8x8xf32>, vector<1x8x8xf32>, vector<1x8x8xf32>, vector<1x8x8xf32> -> vector<4x8x8xf32>
    %113 = vector.extract_strided_slice %23 {offsets = [1, 0], sizes = [1, 8], strides = [1, 1]} : vector<2x8xf32> to vector<1x8xf32>
    %114 = vector.shape_cast %113 : vector<1x8xf32> to vector<1x1x8xf32>
    "tpu.trace_start"() <{level = 10 : i32, message = "hqd,hkd->hqk"}> : () -> ()
    %cst_22 = arith.constant dense<0.000000e+00> : vector<4x8x8xf32>
    %115 = tpu.matmul %94, %103, %cst_22 {dimension_numbers = #tpu.dot_dimension_numbers<[2], [2], [1], [1], [0, 0, 0, 1, 1, 1], [0], [0]>} : vector<4x8x8xf32>, vector<4x8x8xf32>, vector<4x8x8xf32> -> vector<4x8x8xf32>
    "tpu.trace_stop"() : () -> ()
    %116 = vector.broadcast %114 : vector<1x1x8xf32> to vector<4x8x8xf32>
    %117 = arith.addf %115, %116 : vector<4x8x8xf32>
    %cst_23 = arith.constant dense<0xFF800000> : vector<4x8xf32>
    %118 = vector.multi_reduction <maximumf>, %117, %cst_23 [2] : vector<4x8x8xf32> to vector<4x8xf32>
    %119 = vector.shape_cast %118 : vector<4x8xf32> to vector<4x8x1xf32>
    %120 = vector.broadcast %119 : vector<4x8x1xf32> to vector<4x8x8xf32>
    %121 = arith.subf %117, %120 : vector<4x8x8xf32>
    %122 = math.exp %121 : vector<4x8x8xf32>
    %cst_24 = arith.constant dense<0.000000e+00> : vector<4x8xf32>
    %123 = vector.multi_reduction <add>, %122, %cst_24 [2] : vector<4x8x8xf32> to vector<4x8xf32>
    %124 = vector.shape_cast %123 : vector<4x8xf32> to vector<4x8x1xf32>
    %125 = tpu.reciprocal %124 {approx = true} : vector<4x8x1xf32> -> vector<4x8x1xf32>
    %126 = vector.broadcast %125 : vector<4x8x1xf32> to vector<4x8x8xf32>
    %127 = arith.mulf %122, %126 : vector<4x8x8xf32>
    "tpu.trace_start"() <{level = 10 : i32, message = "hqk,hkd->hqd"}> : () -> ()
    %cst_25 = arith.constant dense<0.000000e+00> : vector<4x8x8xf32>
    %128 = tpu.matmul %127, %112, %cst_25 {dimension_numbers = #tpu.dot_dimension_numbers<[2], [1], [1], [2], [0, 0, 0, 1, 1, 2], [0], [0]>} : vector<4x8x8xf32>, vector<4x8x8xf32>, vector<4x8x8xf32> -> vector<4x8x8xf32>
    "tpu.trace_stop"() : () -> ()
    %129 = vector.extract_strided_slice %128 {offsets = [0, 0, 0], sizes = [1, 8, 8], strides = [1, 1, 1]} : vector<4x8x8xf32> to vector<1x8x8xf32>
    %130 = vector.shape_cast %129 : vector<1x8x8xf32> to vector<8x8xf32>
    %131 = vector.extract_strided_slice %128 {offsets = [1, 0, 0], sizes = [1, 8, 8], strides = [1, 1, 1]} : vector<4x8x8xf32> to vector<1x8x8xf32>
    %132 = vector.shape_cast %131 : vector<1x8x8xf32> to vector<8x8xf32>
    %133 = vector.extract_strided_slice %128 {offsets = [2, 0, 0], sizes = [1, 8, 8], strides = [1, 1, 1]} : vector<4x8x8xf32> to vector<1x8x8xf32>
    %134 = vector.shape_cast %133 : vector<1x8x8xf32> to vector<8x8xf32>
    %135 = vector.extract_strided_slice %128 {offsets = [3, 0, 0], sizes = [1, 8, 8], strides = [1, 1, 1]} : vector<4x8x8xf32> to vector<1x8x8xf32>
    %136 = vector.shape_cast %135 : vector<1x8x8xf32> to vector<8x8xf32>
    %137 = tpu.concatenate %130, %132, %134, %136 in 1 : vector<8x8xf32>, vector<8x8xf32>, vector<8x8xf32>, vector<8x8xf32> -> vector<8x32xf32>
    %138 = tpu.concatenate %85, %137 in 0 : vector<8x32xf32>, vector<8x32xf32> -> vector<16x32xf32>
    %c0_26 = arith.constant 0 : index
    %c0_27 = arith.constant 0 : index
    %c0_28 = arith.constant 0 : index
    %139 = vector.load %arg7[%c0_26, %c0_27, %c0_28] : memref<2x32x32xf32, #tpu.memory_space<vmem>>, vector<1x32x32xf32>
    %140 = vector.shape_cast %139 : vector<1x32x32xf32> to vector<32x32xf32>
    %cst_29 = arith.constant dense<0.000000e+00> : vector<16x32xf32>
    %141 = tpu.matmul %138, %140, %cst_29 {dimension_numbers = #tpu.dot_dimension_numbers<[1], [0], [0], [1], [0, 0, 1, 1], [], []>} : vector<16x32xf32>, vector<32x32xf32>, vector<16x32xf32> -> vector<16x32xf32>
    %c0_30 = arith.constant 0 : index
    %c0_31 = arith.constant 0 : index
    %c0_32 = arith.constant 0 : index
    %142 = vector.load %arg8[%c0_30, %c0_31, %c0_32] : memref<2x1x32xf32, #tpu.memory_space<vmem>>, vector<1x1x32xf32>
    %143 = vector.shape_cast %142 : vector<1x1x32xf32> to vector<1x32xf32>
    %144 = vector.broadcast %143 : vector<1x32xf32> to vector<16x32xf32>
    %145 = arith.addf %141, %144 : vector<16x32xf32>
    %146 = arith.addf %22, %145 : vector<16x32xf32>
    %c0_33 = arith.constant 0 : index
    %c0_34 = arith.constant 0 : index
    %c0_35 = arith.constant 0 : index
    %147 = vector.load %arg9[%c0_33, %c0_34, %c0_35] : memref<2x1x32xf32, #tpu.memory_space<vmem>>, vector<1x1x32xf32>
    %148 = vector.shape_cast %147 : vector<1x1x32xf32> to vector<1x32xf32>
    %c0_36 = arith.constant 0 : index
    %c0_37 = arith.constant 0 : index
    %c0_38 = arith.constant 0 : index
    %149 = vector.load %arg10[%c0_36, %c0_37, %c0_38] : memref<2x1x32xf32, #tpu.memory_space<vmem>>, vector<1x1x32xf32>
    %150 = vector.shape_cast %149 : vector<1x1x32xf32> to vector<1x32xf32>
    %cst_39 = arith.constant dense<0.000000e+00> : vector<16xf32>
    %151 = vector.multi_reduction <add>, %146, %cst_39 [1] : vector<16x32xf32> to vector<16xf32>
    %152 = vector.shape_cast %151 : vector<16xf32> to vector<16x1xf32>
    %cst_40 = arith.constant 3.200000e+01 : f32
    %153 = vector.broadcast %cst_40 : f32 to vector<16x1xf32>
    %154 = arith.divf %152, %153 : vector<16x1xf32>
    %155 = vector.broadcast %154 : vector<16x1xf32> to vector<16x32xf32>
    %156 = arith.subf %146, %155 : vector<16x32xf32>
    %157 = arith.mulf %156, %156 : vector<16x32xf32>
    %cst_41 = arith.constant dense<0.000000e+00> : vector<16xf32>
    %158 = vector.multi_reduction <add>, %157, %cst_41 [1] : vector<16x32xf32> to vector<16xf32>
    %159 = vector.shape_cast %158 : vector<16xf32> to vector<16x1xf32>
    %cst_42 = arith.constant 3.200000e+01 : f32
    %160 = vector.broadcast %cst_42 : f32 to vector<16x1xf32>
    %161 = arith.divf %159, %160 : vector<16x1xf32>
    %cst_43 = arith.constant 9.99999996E-13 : f32
    %162 = vector.broadcast %cst_43 : f32 to vector<16x1xf32>
    %163 = arith.addf %161, %162 : vector<16x1xf32>
    %164 = math.rsqrt %163 : vector<16x1xf32>
    %165 = vector.broadcast %164 : vector<16x1xf32> to vector<16x32xf32>
    %166 = arith.mulf %156, %165 : vector<16x32xf32>
    %167 = vector.broadcast %148 : vector<1x32xf32> to vector<16x32xf32>
    %168 = arith.mulf %166, %167 : vector<16x32xf32>
    %169 = vector.broadcast %150 : vector<1x32xf32> to vector<16x32xf32>
    %170 = arith.addf %168, %169 : vector<16x32xf32>
    %c0_44 = arith.constant 0 : index
    %c0_45 = arith.constant 0 : index
    %c0_46 = arith.constant 0 : index
    %171 = vector.load %arg11[%c0_44, %c0_45, %c0_46] : memref<2x32x64xf32, #tpu.memory_space<vmem>>, vector<1x32x64xf32>
    %172 = vector.shape_cast %171 : vector<1x32x64xf32> to vector<32x64xf32>
    %cst_47 = arith.constant dense<0.000000e+00> : vector<16x64xf32>
    %173 = tpu.matmul %170, %172, %cst_47 {dimension_numbers = #tpu.dot_dimension_numbers<[1], [0], [0], [1], [0, 0, 1, 1], [], []>} : vector<16x32xf32>, vector<32x64xf32>, vector<16x64xf32> -> vector<16x64xf32>
    %c0_48 = arith.constant 0 : index
    %c0_49 = arith.constant 0 : index
    %c0_50 = arith.constant 0 : index
    %174 = vector.load %arg12[%c0_48, %c0_49, %c0_50] : memref<2x1x64xf32, #tpu.memory_space<vmem>>, vector<1x1x64xf32>
    %175 = vector.shape_cast %174 : vector<1x1x64xf32> to vector<1x64xf32>
    %176 = vector.broadcast %175 : vector<1x64xf32> to vector<16x64xf32>
    %177 = arith.addf %173, %176 : vector<16x64xf32>
    %178 = arith.mulf %177, %177 : vector<16x64xf32>
    %179 = arith.mulf %177, %178 : vector<16x64xf32>
    %cst_51 = arith.constant 4.471500e-02 : f32
    %180 = vector.broadcast %cst_51 : f32 to vector<16x64xf32>
    %181 = arith.mulf %180, %179 : vector<16x64xf32>
    %182 = arith.addf %177, %181 : vector<16x64xf32>
    %cst_52 = arith.constant 0.797884583 : f32
    %183 = vector.broadcast %cst_52 : f32 to vector<16x64xf32>
    %184 = arith.mulf %183, %182 : vector<16x64xf32>
    %185 = math.tanh %184 : vector<16x64xf32>
    %cst_53 = arith.constant 1.000000e+00 : f32
    %186 = vector.broadcast %cst_53 : f32 to vector<16x64xf32>
    %187 = arith.addf %186, %185 : vector<16x64xf32>
    %cst_54 = arith.constant 5.000000e-01 : f32
    %188 = vector.broadcast %cst_54 : f32 to vector<16x64xf32>
    %189 = arith.mulf %188, %187 : vector<16x64xf32>
    %190 = arith.mulf %177, %189 : vector<16x64xf32>
    %c0_55 = arith.constant 0 : index
    %c0_56 = arith.constant 0 : index
    %c0_57 = arith.constant 0 : index
    %191 = vector.load %arg13[%c0_55, %c0_56, %c0_57] : memref<2x64x32xf32, #tpu.memory_space<vmem>>, vector<1x64x32xf32>
    %192 = vector.shape_cast %191 : vector<1x64x32xf32> to vector<64x32xf32>
    %cst_58 = arith.constant dense<0.000000e+00> : vector<16x32xf32>
    %193 = tpu.matmul %190, %192, %cst_58 {dimension_numbers = #tpu.dot_dimension_numbers<[1], [0], [0], [1], [0, 0, 1, 1], [], []>} : vector<16x64xf32>, vector<64x32xf32>, vector<16x32xf32> -> vector<16x32xf32>
    %c0_59 = arith.constant 0 : index
    %c0_60 = arith.constant 0 : index
    %c0_61 = arith.constant 0 : index
    %194 = vector.load %arg14[%c0_59, %c0_60, %c0_61] : memref<2x1x32xf32, #tpu.memory_space<vmem>>, vector<1x1x32xf32>
    %195 = vector.shape_cast %194 : vector<1x1x32xf32> to vector<1x32xf32>
    %196 = vector.broadcast %195 : vector<1x32xf32> to vector<16x32xf32>
    %197 = arith.addf %193, %196 : vector<16x32xf32>
    %198 = arith.addf %170, %197 : vector<16x32xf32>
    %c0_62 = arith.constant 0 : index
    %c0_63 = arith.constant 0 : index
    %c0_64 = arith.constant 0 : index
    %199 = vector.load %arg15[%c0_62, %c0_63, %c0_64] : memref<2x1x32xf32, #tpu.memory_space<vmem>>, vector<1x1x32xf32>
    %200 = vector.shape_cast %199 : vector<1x1x32xf32> to vector<1x32xf32>
    %c0_65 = arith.constant 0 : index
    %c0_66 = arith.constant 0 : index
    %c0_67 = arith.constant 0 : index
    %201 = vector.load %arg16[%c0_65, %c0_66, %c0_67] : memref<2x1x32xf32, #tpu.memory_space<vmem>>, vector<1x1x32xf32>
    %202 = vector.shape_cast %201 : vector<1x1x32xf32> to vector<1x32xf32>
    %cst_68 = arith.constant dense<0.000000e+00> : vector<16xf32>
    %203 = vector.multi_reduction <add>, %198, %cst_68 [1] : vector<16x32xf32> to vector<16xf32>
    %204 = vector.shape_cast %203 : vector<16xf32> to vector<16x1xf32>
    %cst_69 = arith.constant 3.200000e+01 : f32
    %205 = vector.broadcast %cst_69 : f32 to vector<16x1xf32>
    %206 = arith.divf %204, %205 : vector<16x1xf32>
    %207 = vector.broadcast %206 : vector<16x1xf32> to vector<16x32xf32>
    %208 = arith.subf %198, %207 : vector<16x32xf32>
    %209 = arith.mulf %208, %208 : vector<16x32xf32>
    %cst_70 = arith.constant dense<0.000000e+00> : vector<16xf32>
    %210 = vector.multi_reduction <add>, %209, %cst_70 [1] : vector<16x32xf32> to vector<16xf32>
    %211 = vector.shape_cast %210 : vector<16xf32> to vector<16x1xf32>
    %cst_71 = arith.constant 3.200000e+01 : f32
    %212 = vector.broadcast %cst_71 : f32 to vector<16x1xf32>
    %213 = arith.divf %211, %212 : vector<16x1xf32>
    %cst_72 = arith.constant 9.99999996E-13 : f32
    %214 = vector.broadcast %cst_72 : f32 to vector<16x1xf32>
    %215 = arith.addf %213, %214 : vector<16x1xf32>
    %216 = math.rsqrt %215 : vector<16x1xf32>
    %217 = vector.broadcast %216 : vector<16x1xf32> to vector<16x32xf32>
    %218 = arith.mulf %208, %217 : vector<16x32xf32>
    %219 = vector.broadcast %200 : vector<1x32xf32> to vector<16x32xf32>
    %220 = arith.mulf %218, %219 : vector<16x32xf32>
    %221 = vector.broadcast %202 : vector<1x32xf32> to vector<16x32xf32>
    %222 = arith.addf %220, %221 : vector<16x32xf32>
    %c1 = arith.constant 1 : index
    %c0_73 = arith.constant 0 : index
    %c0_74 = arith.constant 0 : index
    %223 = vector.load %arg5[%c1, %c0_73, %c0_74] : memref<2x32x96xf32, #tpu.memory_space<vmem>>, vector<1x32x96xf32>
    %224 = vector.shape_cast %223 : vector<1x32x96xf32> to vector<32x96xf32>
    %cst_75 = arith.constant dense<0.000000e+00> : vector<16x96xf32>
    %225 = tpu.matmul %222, %224, %cst_75 {dimension_numbers = #tpu.dot_dimension_numbers<[1], [0], [0], [1], [0, 0, 1, 1], [], []>} : vector<16x32xf32>, vector<32x96xf32>, vector<16x96xf32> -> vector<16x96xf32>
    %c1_76 = arith.constant 1 : index
    %c0_77 = arith.constant 0 : index
    %c0_78 = arith.constant 0 : index
    %226 = vector.load %arg6[%c1_76, %c0_77, %c0_78] : memref<2x1x96xf32, #tpu.memory_space<vmem>>, vector<1x1x96xf32>
    %227 = vector.shape_cast %226 : vector<1x1x96xf32> to vector<1x96xf32>
    %228 = vector.broadcast %227 : vector<1x96xf32> to vector<16x96xf32>
    %229 = arith.addf %225, %228 : vector<16x96xf32>
    %230 = vector.extract_strided_slice %229 {offsets = [0, 0], sizes = [16, 32], strides = [1, 1]} : vector<16x96xf32> to vector<16x32xf32>
    %231 = vector.extract_strided_slice %229 {offsets = [0, 32], sizes = [16, 32], strides = [1, 1]} : vector<16x96xf32> to vector<16x32xf32>
    %232 = vector.extract_strided_slice %229 {offsets = [0, 64], sizes = [16, 32], strides = [1, 1]} : vector<16x96xf32> to vector<16x32xf32>
    %233 = vector.extract_strided_slice %230 {offsets = [0, 0], sizes = [8, 8], strides = [1, 1]} : vector<16x32xf32> to vector<8x8xf32>
    %234 = vector.extract_strided_slice %230 {offsets = [0, 8], sizes = [8, 8], strides = [1, 1]} : vector<16x32xf32> to vector<8x8xf32>
    %235 = vector.extract_strided_slice %230 {offsets = [0, 16], sizes = [8, 8], strides = [1, 1]} : vector<16x32xf32> to vector<8x8xf32>
    %236 = vector.extract_strided_slice %230 {offsets = [0, 24], sizes = [8, 8], strides = [1, 1]} : vector<16x32xf32> to vector<8x8xf32>
    %237 = vector.shape_cast %233 : vector<8x8xf32> to vector<1x8x8xf32>
    %238 = vector.shape_cast %234 : vector<8x8xf32> to vector<1x8x8xf32>
    %239 = vector.shape_cast %235 : vector<8x8xf32> to vector<1x8x8xf32>
    %240 = vector.shape_cast %236 : vector<8x8xf32> to vector<1x8x8xf32>
    %241 = tpu.concatenate %237, %238, %239, %240 in 0 : vector<1x8x8xf32>, vector<1x8x8xf32>, vector<1x8x8xf32>, vector<1x8x8xf32> -> vector<4x8x8xf32>
    %242 = vector.extract_strided_slice %231 {offsets = [0, 0], sizes = [8, 8], strides = [1, 1]} : vector<16x32xf32> to vector<8x8xf32>
    %243 = vector.extract_strided_slice %231 {offsets = [0, 8], sizes = [8, 8], strides = [1, 1]} : vector<16x32xf32> to vector<8x8xf32>
    %244 = vector.extract_strided_slice %231 {offsets = [0, 16], sizes = [8, 8], strides = [1, 1]} : vector<16x32xf32> to vector<8x8xf32>
    %245 = vector.extract_strided_slice %231 {offsets = [0, 24], sizes = [8, 8], strides = [1, 1]} : vector<16x32xf32> to vector<8x8xf32>
    %246 = vector.shape_cast %242 : vector<8x8xf32> to vector<1x8x8xf32>
    %247 = vector.shape_cast %243 : vector<8x8xf32> to vector<1x8x8xf32>
    %248 = vector.shape_cast %244 : vector<8x8xf32> to vector<1x8x8xf32>
    %249 = vector.shape_cast %245 : vector<8x8xf32> to vector<1x8x8xf32>
    %250 = tpu.concatenate %246, %247, %248, %249 in 0 : vector<1x8x8xf32>, vector<1x8x8xf32>, vector<1x8x8xf32>, vector<1x8x8xf32> -> vector<4x8x8xf32>
    %251 = vector.extract_strided_slice %232 {offsets = [0, 0], sizes = [8, 8], strides = [1, 1]} : vector<16x32xf32> to vector<8x8xf32>
    %252 = vector.extract_strided_slice %232 {offsets = [0, 8], sizes = [8, 8], strides = [1, 1]} : vector<16x32xf32> to vector<8x8xf32>
    %253 = vector.extract_strided_slice %232 {offsets = [0, 16], sizes = [8, 8], strides = [1, 1]} : vector<16x32xf32> to vector<8x8xf32>
    %254 = vector.extract_strided_slice %232 {offsets = [0, 24], sizes = [8, 8], strides = [1, 1]} : vector<16x32xf32> to vector<8x8xf32>
    %255 = vector.shape_cast %251 : vector<8x8xf32> to vector<1x8x8xf32>
    %256 = vector.shape_cast %252 : vector<8x8xf32> to vector<1x8x8xf32>
    %257 = vector.shape_cast %253 : vector<8x8xf32> to vector<1x8x8xf32>
    %258 = vector.shape_cast %254 : vector<8x8xf32> to vector<1x8x8xf32>
    %259 = tpu.concatenate %255, %256, %257, %258 in 0 : vector<1x8x8xf32>, vector<1x8x8xf32>, vector<1x8x8xf32>, vector<1x8x8xf32> -> vector<4x8x8xf32>
    %260 = vector.extract_strided_slice %23 {offsets = [0, 0], sizes = [1, 8], strides = [1, 1]} : vector<2x8xf32> to vector<1x8xf32>
    %261 = vector.shape_cast %260 : vector<1x8xf32> to vector<1x1x8xf32>
    "tpu.trace_start"() <{level = 10 : i32, message = "hqd,hkd->hqk"}> : () -> ()
    %cst_79 = arith.constant dense<0.000000e+00> : vector<4x8x8xf32>
    %262 = tpu.matmul %241, %250, %cst_79 {dimension_numbers = #tpu.dot_dimension_numbers<[2], [2], [1], [1], [0, 0, 0, 1, 1, 1], [0], [0]>} : vector<4x8x8xf32>, vector<4x8x8xf32>, vector<4x8x8xf32> -> vector<4x8x8xf32>
    "tpu.trace_stop"() : () -> ()
    %263 = vector.broadcast %261 : vector<1x1x8xf32> to vector<4x8x8xf32>
    %264 = arith.addf %262, %263 : vector<4x8x8xf32>
    %cst_80 = arith.constant dense<0xFF800000> : vector<4x8xf32>
    %265 = vector.multi_reduction <maximumf>, %264, %cst_80 [2] : vector<4x8x8xf32> to vector<4x8xf32>
    %266 = vector.shape_cast %265 : vector<4x8xf32> to vector<4x8x1xf32>
    %267 = vector.broadcast %266 : vector<4x8x1xf32> to vector<4x8x8xf32>
    %268 = arith.subf %264, %267 : vector<4x8x8xf32>
    %269 = math.exp %268 : vector<4x8x8xf32>
    %cst_81 = arith.constant dense<0.000000e+00> : vector<4x8xf32>
    %270 = vector.multi_reduction <add>, %269, %cst_81 [2] : vector<4x8x8xf32> to vector<4x8xf32>
    %271 = vector.shape_cast %270 : vector<4x8xf32> to vector<4x8x1xf32>
    %272 = tpu.reciprocal %271 {approx = true} : vector<4x8x1xf32> -> vector<4x8x1xf32>
    %273 = vector.broadcast %272 : vector<4x8x1xf32> to vector<4x8x8xf32>
    %274 = arith.mulf %269, %273 : vector<4x8x8xf32>
    "tpu.trace_start"() <{level = 10 : i32, message = "hqk,hkd->hqd"}> : () -> ()
    %cst_82 = arith.constant dense<0.000000e+00> : vector<4x8x8xf32>
    %275 = tpu.matmul %274, %259, %cst_82 {dimension_numbers = #tpu.dot_dimension_numbers<[2], [1], [1], [2], [0, 0, 0, 1, 1, 2], [0], [0]>} : vector<4x8x8xf32>, vector<4x8x8xf32>, vector<4x8x8xf32> -> vector<4x8x8xf32>
    "tpu.trace_stop"() : () -> ()
    %276 = vector.extract_strided_slice %275 {offsets = [0, 0, 0], sizes = [1, 8, 8], strides = [1, 1, 1]} : vector<4x8x8xf32> to vector<1x8x8xf32>
    %277 = vector.shape_cast %276 : vector<1x8x8xf32> to vector<8x8xf32>
    %278 = vector.extract_strided_slice %275 {offsets = [1, 0, 0], sizes = [1, 8, 8], strides = [1, 1, 1]} : vector<4x8x8xf32> to vector<1x8x8xf32>
    %279 = vector.shape_cast %278 : vector<1x8x8xf32> to vector<8x8xf32>
    %280 = vector.extract_strided_slice %275 {offsets = [2, 0, 0], sizes = [1, 8, 8], strides = [1, 1, 1]} : vector<4x8x8xf32> to vector<1x8x8xf32>
    %281 = vector.shape_cast %280 : vector<1x8x8xf32> to vector<8x8xf32>
    %282 = vector.extract_strided_slice %275 {offsets = [3, 0, 0], sizes = [1, 8, 8], strides = [1, 1, 1]} : vector<4x8x8xf32> to vector<1x8x8xf32>
    %283 = vector.shape_cast %282 : vector<1x8x8xf32> to vector<8x8xf32>
    %284 = tpu.concatenate %277, %279, %281, %283 in 1 : vector<8x8xf32>, vector<8x8xf32>, vector<8x8xf32>, vector<8x8xf32> -> vector<8x32xf32>
    %285 = vector.extract_strided_slice %230 {offsets = [8, 0], sizes = [8, 8], strides = [1, 1]} : vector<16x32xf32> to vector<8x8xf32>
    %286 = vector.extract_strided_slice %230 {offsets = [8, 8], sizes = [8, 8], strides = [1, 1]} : vector<16x32xf32> to vector<8x8xf32>
    %287 = vector.extract_strided_slice %230 {offsets = [8, 16], sizes = [8, 8], strides = [1, 1]} : vector<16x32xf32> to vector<8x8xf32>
    %288 = vector.extract_strided_slice %230 {offsets = [8, 24], sizes = [8, 8], strides = [1, 1]} : vector<16x32xf32> to vector<8x8xf32>
    %289 = vector.shape_cast %285 : vector<8x8xf32> to vector<1x8x8xf32>
    %290 = vector.shape_cast %286 : vector<8x8xf32> to vector<1x8x8xf32>
    %291 = vector.shape_cast %287 : vector<8x8xf32> to vector<1x8x8xf32>
    %292 = vector.shape_cast %288 : vector<8x8xf32> to vector<1x8x8xf32>
    %293 = tpu.concatenate %289, %290, %291, %292 in 0 : vector<1x8x8xf32>, vector<1x8x8xf32>, vector<1x8x8xf32>, vector<1x8x8xf32> -> vector<4x8x8xf32>
    %294 = vector.extract_strided_slice %231 {offsets = [8, 0], sizes = [8, 8], strides = [1, 1]} : vector<16x32xf32> to vector<8x8xf32>
    %295 = vector.extract_strided_slice %231 {offsets = [8, 8], sizes = [8, 8], strides = [1, 1]} : vector<16x32xf32> to vector<8x8xf32>
    %296 = vector.extract_strided_slice %231 {offsets = [8, 16], sizes = [8, 8], strides = [1, 1]} : vector<16x32xf32> to vector<8x8xf32>
    %297 = vector.extract_strided_slice %231 {offsets = [8, 24], sizes = [8, 8], strides = [1, 1]} : vector<16x32xf32> to vector<8x8xf32>
    %298 = vector.shape_cast %294 : vector<8x8xf32> to vector<1x8x8xf32>
    %299 = vector.shape_cast %295 : vector<8x8xf32> to vector<1x8x8xf32>
    %300 = vector.shape_cast %296 : vector<8x8xf32> to vector<1x8x8xf32>
    %301 = vector.shape_cast %297 : vector<8x8xf32> to vector<1x8x8xf32>
    %302 = tpu.concatenate %298, %299, %300, %301 in 0 : vector<1x8x8xf32>, vector<1x8x8xf32>, vector<1x8x8xf32>, vector<1x8x8xf32> -> vector<4x8x8xf32>
    %303 = vector.extract_strided_slice %232 {offsets = [8, 0], sizes = [8, 8], strides = [1, 1]} : vector<16x32xf32> to vector<8x8xf32>
    %304 = vector.extract_strided_slice %232 {offsets = [8, 8], sizes = [8, 8], strides = [1, 1]} : vector<16x32xf32> to vector<8x8xf32>
    %305 = vector.extract_strided_slice %232 {offsets = [8, 16], sizes = [8, 8], strides = [1, 1]} : vector<16x32xf32> to vector<8x8xf32>
    %306 = vector.extract_strided_slice %232 {offsets = [8, 24], sizes = [8, 8], strides = [1, 1]} : vector<16x32xf32> to vector<8x8xf32>
    %307 = vector.shape_cast %303 : vector<8x8xf32> to vector<1x8x8xf32>
    %308 = vector.shape_cast %304 : vector<8x8xf32> to vector<1x8x8xf32>
    %309 = vector.shape_cast %305 : vector<8x8xf32> to vector<1x8x8xf32>
    %310 = vector.shape_cast %306 : vector<8x8xf32> to vector<1x8x8xf32>
    %311 = tpu.concatenate %307, %308, %309, %310 in 0 : vector<1x8x8xf32>, vector<1x8x8xf32>, vector<1x8x8xf32>, vector<1x8x8xf32> -> vector<4x8x8xf32>
    %312 = vector.extract_strided_slice %23 {offsets = [1, 0], sizes = [1, 8], strides = [1, 1]} : vector<2x8xf32> to vector<1x8xf32>
    %313 = vector.shape_cast %312 : vector<1x8xf32> to vector<1x1x8xf32>
    "tpu.trace_start"() <{level = 10 : i32, message = "hqd,hkd->hqk"}> : () -> ()
    %cst_83 = arith.constant dense<0.000000e+00> : vector<4x8x8xf32>
    %314 = tpu.matmul %293, %302, %cst_83 {dimension_numbers = #tpu.dot_dimension_numbers<[2], [2], [1], [1], [0, 0, 0, 1, 1, 1], [0], [0]>} : vector<4x8x8xf32>, vector<4x8x8xf32>, vector<4x8x8xf32> -> vector<4x8x8xf32>
    "tpu.trace_stop"() : () -> ()
    %315 = vector.broadcast %313 : vector<1x1x8xf32> to vector<4x8x8xf32>
    %316 = arith.addf %314, %315 : vector<4x8x8xf32>
    %cst_84 = arith.constant dense<0xFF800000> : vector<4x8xf32>
    %317 = vector.multi_reduction <maximumf>, %316, %cst_84 [2] : vector<4x8x8xf32> to vector<4x8xf32>
    %318 = vector.shape_cast %317 : vector<4x8xf32> to vector<4x8x1xf32>
    %319 = vector.broadcast %318 : vector<4x8x1xf32> to vector<4x8x8xf32>
    %320 = arith.subf %316, %319 : vector<4x8x8xf32>
    %321 = math.exp %320 : vector<4x8x8xf32>
    %cst_85 = arith.constant dense<0.000000e+00> : vector<4x8xf32>
    %322 = vector.multi_reduction <add>, %321, %cst_85 [2] : vector<4x8x8xf32> to vector<4x8xf32>
    %323 = vector.shape_cast %322 : vector<4x8xf32> to vector<4x8x1xf32>
    %324 = tpu.reciprocal %323 {approx = true} : vector<4x8x1xf32> -> vector<4x8x1xf32>
    %325 = vector.broadcast %324 : vector<4x8x1xf32> to vector<4x8x8xf32>
    %326 = arith.mulf %321, %325 : vector<4x8x8xf32>
    "tpu.trace_start"() <{level = 10 : i32, message = "hqk,hkd->hqd"}> : () -> ()
    %cst_86 = arith.constant dense<0.000000e+00> : vector<4x8x8xf32>
    %327 = tpu.matmul %326, %311, %cst_86 {dimension_numbers = #tpu.dot_dimension_numbers<[2], [1], [1], [2], [0, 0, 0, 1, 1, 2], [0], [0]>} : vector<4x8x8xf32>, vector<4x8x8xf32>, vector<4x8x8xf32> -> vector<4x8x8xf32>
    "tpu.trace_stop"() : () -> ()
    %328 = vector.extract_strided_slice %327 {offsets = [0, 0, 0], sizes = [1, 8, 8], strides = [1, 1, 1]} : vector<4x8x8xf32> to vector<1x8x8xf32>
    %329 = vector.shape_cast %328 : vector<1x8x8xf32> to vector<8x8xf32>
    %330 = vector.extract_strided_slice %327 {offsets = [1, 0, 0], sizes = [1, 8, 8], strides = [1, 1, 1]} : vector<4x8x8xf32> to vector<1x8x8xf32>
    %331 = vector.shape_cast %330 : vector<1x8x8xf32> to vector<8x8xf32>
    %332 = vector.extract_strided_slice %327 {offsets = [2, 0, 0], sizes = [1, 8, 8], strides = [1, 1, 1]} : vector<4x8x8xf32> to vector<1x8x8xf32>
    %333 = vector.shape_cast %332 : vector<1x8x8xf32> to vector<8x8xf32>
    %334 = vector.extract_strided_slice %327 {offsets = [3, 0, 0], sizes = [1, 8, 8], strides = [1, 1, 1]} : vector<4x8x8xf32> to vector<1x8x8xf32>
    %335 = vector.shape_cast %334 : vector<1x8x8xf32> to vector<8x8xf32>
    %336 = tpu.concatenate %329, %331, %333, %335 in 1 : vector<8x8xf32>, vector<8x8xf32>, vector<8x8xf32>, vector<8x8xf32> -> vector<8x32xf32>
    %337 = tpu.concatenate %284, %336 in 0 : vector<8x32xf32>, vector<8x32xf32> -> vector<16x32xf32>
    %c1_87 = arith.constant 1 : index
    %c0_88 = arith.constant 0 : index
    %c0_89 = arith.constant 0 : index
    %338 = vector.load %arg7[%c1_87, %c0_88, %c0_89] : memref<2x32x32xf32, #tpu.memory_space<vmem>>, vector<1x32x32xf32>
    %339 = vector.shape_cast %338 : vector<1x32x32xf32> to vector<32x32xf32>
    %cst_90 = arith.constant dense<0.000000e+00> : vector<16x32xf32>
    %340 = tpu.matmul %337, %339, %cst_90 {dimension_numbers = #tpu.dot_dimension_numbers<[1], [0], [0], [1], [0, 0, 1, 1], [], []>} : vector<16x32xf32>, vector<32x32xf32>, vector<16x32xf32> -> vector<16x32xf32>
    %c1_91 = arith.constant 1 : index
    %c0_92 = arith.constant 0 : index
    %c0_93 = arith.constant 0 : index
    %341 = vector.load %arg8[%c1_91, %c0_92, %c0_93] : memref<2x1x32xf32, #tpu.memory_space<vmem>>, vector<1x1x32xf32>
    %342 = vector.shape_cast %341 : vector<1x1x32xf32> to vector<1x32xf32>
    %343 = vector.broadcast %342 : vector<1x32xf32> to vector<16x32xf32>
    %344 = arith.addf %340, %343 : vector<16x32xf32>
    %345 = arith.addf %222, %344 : vector<16x32xf32>
    %c1_94 = arith.constant 1 : index
    %c0_95 = arith.constant 0 : index
    %c0_96 = arith.constant 0 : index
    %346 = vector.load %arg9[%c1_94, %c0_95, %c0_96] : memref<2x1x32xf32, #tpu.memory_space<vmem>>, vector<1x1x32xf32>
    %347 = vector.shape_cast %346 : vector<1x1x32xf32> to vector<1x32xf32>
    %c1_97 = arith.constant 1 : index
    %c0_98 = arith.constant 0 : index
    %c0_99 = arith.constant 0 : index
    %348 = vector.load %arg10[%c1_97, %c0_98, %c0_99] : memref<2x1x32xf32, #tpu.memory_space<vmem>>, vector<1x1x32xf32>
    %349 = vector.shape_cast %348 : vector<1x1x32xf32> to vector<1x32xf32>
    %cst_100 = arith.constant dense<0.000000e+00> : vector<16xf32>
    %350 = vector.multi_reduction <add>, %345, %cst_100 [1] : vector<16x32xf32> to vector<16xf32>
    %351 = vector.shape_cast %350 : vector<16xf32> to vector<16x1xf32>
    %cst_101 = arith.constant 3.200000e+01 : f32
    %352 = vector.broadcast %cst_101 : f32 to vector<16x1xf32>
    %353 = arith.divf %351, %352 : vector<16x1xf32>
    %354 = vector.broadcast %353 : vector<16x1xf32> to vector<16x32xf32>
    %355 = arith.subf %345, %354 : vector<16x32xf32>
    %356 = arith.mulf %355, %355 : vector<16x32xf32>
    %cst_102 = arith.constant dense<0.000000e+00> : vector<16xf32>
    %357 = vector.multi_reduction <add>, %356, %cst_102 [1] : vector<16x32xf32> to vector<16xf32>
    %358 = vector.shape_cast %357 : vector<16xf32> to vector<16x1xf32>
    %cst_103 = arith.constant 3.200000e+01 : f32
    %359 = vector.broadcast %cst_103 : f32 to vector<16x1xf32>
    %360 = arith.divf %358, %359 : vector<16x1xf32>
    %cst_104 = arith.constant 9.99999996E-13 : f32
    %361 = vector.broadcast %cst_104 : f32 to vector<16x1xf32>
    %362 = arith.addf %360, %361 : vector<16x1xf32>
    %363 = math.rsqrt %362 : vector<16x1xf32>
    %364 = vector.broadcast %363 : vector<16x1xf32> to vector<16x32xf32>
    %365 = arith.mulf %355, %364 : vector<16x32xf32>
    %366 = vector.broadcast %347 : vector<1x32xf32> to vector<16x32xf32>
    %367 = arith.mulf %365, %366 : vector<16x32xf32>
    %368 = vector.broadcast %349 : vector<1x32xf32> to vector<16x32xf32>
    %369 = arith.addf %367, %368 : vector<16x32xf32>
    %c1_105 = arith.constant 1 : index
    %c0_106 = arith.constant 0 : index
    %c0_107 = arith.constant 0 : index
    %370 = vector.load %arg11[%c1_105, %c0_106, %c0_107] : memref<2x32x64xf32, #tpu.memory_space<vmem>>, vector<1x32x64xf32>
    %371 = vector.shape_cast %370 : vector<1x32x64xf32> to vector<32x64xf32>
    %cst_108 = arith.constant dense<0.000000e+00> : vector<16x64xf32>
    %372 = tpu.matmul %369, %371, %cst_108 {dimension_numbers = #tpu.dot_dimension_numbers<[1], [0], [0], [1], [0, 0, 1, 1], [], []>} : vector<16x32xf32>, vector<32x64xf32>, vector<16x64xf32> -> vector<16x64xf32>
    %c1_109 = arith.constant 1 : index
    %c0_110 = arith.constant 0 : index
    %c0_111 = arith.constant 0 : index
    %373 = vector.load %arg12[%c1_109, %c0_110, %c0_111] : memref<2x1x64xf32, #tpu.memory_space<vmem>>, vector<1x1x64xf32>
    %374 = vector.shape_cast %373 : vector<1x1x64xf32> to vector<1x64xf32>
    %375 = vector.broadcast %374 : vector<1x64xf32> to vector<16x64xf32>
    %376 = arith.addf %372, %375 : vector<16x64xf32>
    %377 = arith.mulf %376, %376 : vector<16x64xf32>
    %378 = arith.mulf %376, %377 : vector<16x64xf32>
    %cst_112 = arith.constant 4.471500e-02 : f32
    %379 = vector.broadcast %cst_112 : f32 to vector<16x64xf32>
    %380 = arith.mulf %379, %378 : vector<16x64xf32>
    %381 = arith.addf %376, %380 : vector<16x64xf32>
    %cst_113 = arith.constant 0.797884583 : f32
    %382 = vector.broadcast %cst_113 : f32 to vector<16x64xf32>
    %383 = arith.mulf %382, %381 : vector<16x64xf32>
    %384 = math.tanh %383 : vector<16x64xf32>
    %cst_114 = arith.constant 1.000000e+00 : f32
    %385 = vector.broadcast %cst_114 : f32 to vector<16x64xf32>
    %386 = arith.addf %385, %384 : vector<16x64xf32>
    %cst_115 = arith.constant 5.000000e-01 : f32
    %387 = vector.broadcast %cst_115 : f32 to vector<16x64xf32>
    %388 = arith.mulf %387, %386 : vector<16x64xf32>
    %389 = arith.mulf %376, %388 : vector<16x64xf32>
    %c1_116 = arith.constant 1 : index
    %c0_117 = arith.constant 0 : index
    %c0_118 = arith.constant 0 : index
    %390 = vector.load %arg13[%c1_116, %c0_117, %c0_118] : memref<2x64x32xf32, #tpu.memory_space<vmem>>, vector<1x64x32xf32>
    %391 = vector.shape_cast %390 : vector<1x64x32xf32> to vector<64x32xf32>
    %cst_119 = arith.constant dense<0.000000e+00> : vector<16x32xf32>
    %392 = tpu.matmul %389, %391, %cst_119 {dimension_numbers = #tpu.dot_dimension_numbers<[1], [0], [0], [1], [0, 0, 1, 1], [], []>} : vector<16x64xf32>, vector<64x32xf32>, vector<16x32xf32> -> vector<16x32xf32>
    %c1_120 = arith.constant 1 : index
    %c0_121 = arith.constant 0 : index
    %c0_122 = arith.constant 0 : index
    %393 = vector.load %arg14[%c1_120, %c0_121, %c0_122] : memref<2x1x32xf32, #tpu.memory_space<vmem>>, vector<1x1x32xf32>
    %394 = vector.shape_cast %393 : vector<1x1x32xf32> to vector<1x32xf32>
    %395 = vector.broadcast %394 : vector<1x32xf32> to vector<16x32xf32>
    %396 = arith.addf %392, %395 : vector<16x32xf32>
    %397 = arith.addf %369, %396 : vector<16x32xf32>
    %c1_123 = arith.constant 1 : index
    %c0_124 = arith.constant 0 : index
    %c0_125 = arith.constant 0 : index
    %398 = vector.load %arg15[%c1_123, %c0_124, %c0_125] : memref<2x1x32xf32, #tpu.memory_space<vmem>>, vector<1x1x32xf32>
    %399 = vector.shape_cast %398 : vector<1x1x32xf32> to vector<1x32xf32>
    %c1_126 = arith.constant 1 : index
    %c0_127 = arith.constant 0 : index
    %c0_128 = arith.constant 0 : index
    %400 = vector.load %arg16[%c1_126, %c0_127, %c0_128] : memref<2x1x32xf32, #tpu.memory_space<vmem>>, vector<1x1x32xf32>
    %401 = vector.shape_cast %400 : vector<1x1x32xf32> to vector<1x32xf32>
    %cst_129 = arith.constant dense<0.000000e+00> : vector<16xf32>
    %402 = vector.multi_reduction <add>, %397, %cst_129 [1] : vector<16x32xf32> to vector<16xf32>
    %403 = vector.shape_cast %402 : vector<16xf32> to vector<16x1xf32>
    %cst_130 = arith.constant 3.200000e+01 : f32
    %404 = vector.broadcast %cst_130 : f32 to vector<16x1xf32>
    %405 = arith.divf %403, %404 : vector<16x1xf32>
    %406 = vector.broadcast %405 : vector<16x1xf32> to vector<16x32xf32>
    %407 = arith.subf %397, %406 : vector<16x32xf32>
    %408 = arith.mulf %407, %407 : vector<16x32xf32>
    %cst_131 = arith.constant dense<0.000000e+00> : vector<16xf32>
    %409 = vector.multi_reduction <add>, %408, %cst_131 [1] : vector<16x32xf32> to vector<16xf32>
    %410 = vector.shape_cast %409 : vector<16xf32> to vector<16x1xf32>
    %cst_132 = arith.constant 3.200000e+01 : f32
    %411 = vector.broadcast %cst_132 : f32 to vector<16x1xf32>
    %412 = arith.divf %410, %411 : vector<16x1xf32>
    %cst_133 = arith.constant 9.99999996E-13 : f32
    %413 = vector.broadcast %cst_133 : f32 to vector<16x1xf32>
    %414 = arith.addf %412, %413 : vector<16x1xf32>
    %415 = math.rsqrt %414 : vector<16x1xf32>
    %416 = vector.broadcast %415 : vector<16x1xf32> to vector<16x32xf32>
    %417 = arith.mulf %407, %416 : vector<16x32xf32>
    %418 = vector.broadcast %399 : vector<1x32xf32> to vector<16x32xf32>
    %419 = arith.mulf %417, %418 : vector<16x32xf32>
    %420 = vector.broadcast %401 : vector<1x32xf32> to vector<16x32xf32>
    %421 = arith.addf %419, %420 : vector<16x32xf32>
    %c0_134 = arith.constant 0 : index
    %c0_135 = arith.constant 0 : index
    %422 = vector.load %arg17[%c0_134, %c0_135] : memref<32x128xf32, #tpu.memory_space<vmem>>, vector<32x128xf32>
    %cst_136 = arith.constant dense<0.000000e+00> : vector<16x128xf32>
    %423 = tpu.matmul %421, %422, %cst_136 {dimension_numbers = #tpu.dot_dimension_numbers<[1], [0], [0], [1], [0, 0, 1, 1], [], []>} : vector<16x32xf32>, vector<32x128xf32>, vector<16x128xf32> -> vector<16x128xf32>
    %c0_137 = arith.constant 0 : index
    %c0_138 = arith.constant 0 : index
    %424 = vector.load %arg18[%c0_137, %c0_138] : memref<1x128xf32, #tpu.memory_space<vmem>>, vector<1x128xf32>
    %425 = vector.broadcast %424 : vector<1x128xf32> to vector<16x128xf32>
    %426 = arith.addf %423, %425 : vector<16x128xf32>
    %c0_139 = arith.constant 0 : index
    %c0_140 = arith.constant 0 : index
    %427 = vector.load %arg19[%c0_139, %c0_140] : memref<16x128xf32, #tpu.memory_space<vmem>>, vector<16x128xf32>
    tpu.vector_store %arg19[%c0_139, %c0_140], %426 {strides = array<i32>} : memref<16x128xf32, #tpu.memory_space<vmem>>, vector<16x128xf32>,
    return
  }
  func.func @transform_0(%arg0: i32) -> (i32, i32) {
    %c0_i32 = arith.constant 0 : i32
    %c0_i32_0 = arith.constant 0 : i32
    %c0_i32_1 = arith.constant 0 : i32
    return %c0_i32, %c0_i32_0 : i32, i32
  }
  func.func @transform_1(%arg0: i32) -> (i32, i32) {
    %c0_i32 = arith.constant 0 : i32
    %c0_i32_0 = arith.constant 0 : i32
    %c0_i32_1 = arith.constant 0 : i32
    return %c0_i32, %c0_i32_0 : i32, i32
  }
  func.func @transform_2(%arg0: i32) -> (i32, i32) {
    %c0_i32 = arith.constant 0 : i32
    %c0_i32_0 = arith.constant 0 : i32
    %c0_i32_1 = arith.constant 0 : i32
    return %c0_i32, %c0_i32_0 : i32, i32
  }
  func.func @transform_3(%arg0: i32) -> (i32, i32) {
    %c0_i32 = arith.constant 0 : i32
    %c0_i32_0 = arith.constant 0 : i32
    %c0_i32_1 = arith.constant 0 : i32
    return %c0_i32, %c0_i32_0 : i32, i32
  }
  func.func @transform_4(%arg0: i32) -> (i32, i32, i32) {
    %c0_i32 = arith.constant 0 : i32
    %c0_i32_0 = arith.constant 0 : i32
    %c0_i32_1 = arith.constant 0 : i32
    %c0_i32_2 = arith.constant 0 : i32
    return %c0_i32, %c0_i32_0, %c0_i32_1 : i32, i32, i32
  }
  func.func @transform_5(%arg0: i32) -> (i32, i32, i32) {
    %c0_i32 = arith.constant 0 : i32
    %c0_i32_0 = arith.constant 0 : i32
    %c0_i32_1 = arith.constant 0 : i32
    %c0_i32_2 = arith.constant 0 : i32
    return %c0_i32, %c0_i32_0, %c0_i32_1 : i32, i32, i32
  }
  func.func @transform_6(%arg0: i32) -> (i32, i32, i32) {
    %c0_i32 = arith.constant 0 : i32
    %c0_i32_0 = arith.constant 0 : i32
    %c0_i32_1 = arith.constant 0 : i32
    %c0_i32_2 = arith.constant 0 : i32
    return %c0_i32, %c0_i32_0, %c0_i32_1 : i32, i32, i32
  }
  func.func @transform_7(%arg0: i32) -> (i32, i32, i32) {
    %c0_i32 = arith.constant 0 : i32
    %c0_i32_0 = arith.constant 0 : i32
    %c0_i32_1 = arith.constant 0 : i32
    %c0_i32_2 = arith.constant 0 : i32
    return %c0_i32, %c0_i32_0, %c0_i32_1 : i32, i32, i32
  }
  func.func @transform_8(%arg0: i32) -> (i32, i32, i32) {
    %c0_i32 = arith.constant 0 : i32
    %c0_i32_0 = arith.constant 0 : i32
    %c0_i32_1 = arith.constant 0 : i32
    %c0_i32_2 = arith.constant 0 : i32
    return %c0_i32, %c0_i32_0, %c0_i32_1 : i32, i32, i32
  }
  func.func @transform_9(%arg0: i32) -> (i32, i32, i32) {
    %c0_i32 = arith.constant 0 : i32
    %c0_i32_0 = arith.constant 0 : i32
    %c0_i32_1 = arith.constant 0 : i32
    %c0_i32_2 = arith.constant 0 : i32
    return %c0_i32, %c0_i32_0, %c0_i32_1 : i32, i32, i32
  }
  func.func @transform_10(%arg0: i32) -> (i32, i32, i32) {
    %c0_i32 = arith.constant 0 : i32
    %c0_i32_0 = arith.constant 0 : i32
    %c0_i32_1 = arith.constant 0 : i32
    %c0_i32_2 = arith.constant 0 : i32
    return %c0_i32, %c0_i32_0, %c0_i32_1 : i32, i32, i32
  }
  func.func @transform_11(%arg0: i32) -> (i32, i32, i32) {
    %c0_i32 = arith.constant 0 : i32
    %c0_i32_0 = arith.constant 0 : i32
    %c0_i32_1 = arith.constant 0 : i32
    %c0_i32_2 = arith.constant 0 : i32
    return %c0_i32, %c0_i32_0, %c0_i32_1 : i32, i32, i32
  }
  func.func @transform_12(%arg0: i32) -> (i32, i32, i32) {
    %c0_i32 = arith.constant 0 : i32
    %c0_i32_0 = arith.constant 0 : i32
    %c0_i32_1 = arith.constant 0 : i32
    %c0_i32_2 = arith.constant 0 : i32
    return %c0_i32, %c0_i32_0, %c0_i32_1 : i32, i32, i32
  }
  func.func @transform_13(%arg0: i32) -> (i32, i32, i32) {
    %c0_i32 = arith.constant 0 : i32
    %c0_i32_0 = arith.constant 0 : i32
    %c0_i32_1 = arith.constant 0 : i32
    %c0_i32_2 = arith.constant 0 : i32
    return %c0_i32, %c0_i32_0, %c0_i32_1 : i32, i32, i32
  }
  func.func @transform_14(%arg0: i32) -> (i32, i32, i32) {
    %c0_i32 = arith.constant 0 : i32
    %c0_i32_0 = arith.constant 0 : i32
    %c0_i32_1 = arith.constant 0 : i32
    %c0_i32_2 = arith.constant 0 : i32
    return %c0_i32, %c0_i32_0, %c0_i32_1 : i32, i32, i32
  }
  func.func @transform_15(%arg0: i32) -> (i32, i32, i32) {
    %c0_i32 = arith.constant 0 : i32
    %c0_i32_0 = arith.constant 0 : i32
    %c0_i32_1 = arith.constant 0 : i32
    %c0_i32_2 = arith.constant 0 : i32
    return %c0_i32, %c0_i32_0, %c0_i32_1 : i32, i32, i32
  }
  func.func @transform_16(%arg0: i32) -> (i32, i32) {
    %c0_i32 = arith.constant 0 : i32
    %c0_i32_0 = arith.constant 0 : i32
    %c0_i32_1 = arith.constant 0 : i32
    return %c0_i32, %c0_i32_0 : i32, i32
  }
  func.func @transform_17(%arg0: i32) -> (i32, i32) {
    %c0_i32 = arith.constant 0 : i32
    %c0_i32_0 = arith.constant 0 : i32
    %c0_i32_1 = arith.constant 0 : i32
    return %c0_i32, %c0_i32_0 : i32, i32
  }
  func.func @transform_18(%arg0: i32) -> (i32, i32) {
    %c0_i32 = arith.constant 0 : i32
    %c0_i32_0 = arith.constant 0 : i32
    %c0_i32_1 = arith.constant 0 : i32
    return %c0_i32, %c0_i32_0 : i32, i32
  }
}

</mosaic_0001>

<llo_original>
// kernel: qa_forward.1
$region0: #{qa_forward.1}
  #allocation0 [shape = 'u32[]', space=smem, size = 0x4, offset = 0x4, fixed_abs, tag = 'smem constant byte address 0x4 - core index']
  #allocation1 [shape = 'u32[72,128]{1,0:T(1,128)}', space=vmem, size = 0x9000, scoped, tag = 'internal scratch']
  %s0 = inlined_call_operand.vmem [shape: f32[16,32], index: 0, kind: input, shape index: {}]
  %s1 = inlined_call_operand.vmem [shape: f32[2,8], index: 1, kind: input, shape index: {}]
  %s2 = inlined_call_operand.vmem [shape: f32[1,32], index: 2, kind: input, shape index: {}]
  %s3 = inlined_call_operand.vmem [shape: f32[1,32], index: 3, kind: input, shape index: {}]
  %s4 = inlined_call_operand.vmem [shape: f32[2,32,96], index: 4, kind: input, shape index: {}]
  %s5 = inlined_call_operand.vmem [shape: f32[2,1,96], index: 5, kind: input, shape index: {}]
  %s6 = inlined_call_operand.vmem [shape: f32[2,32,32], index: 6, kind: input, shape index: {}]
  %s7 = inlined_call_operand.vmem [shape: f32[2,1,32], index: 7, kind: input, shape index: {}]
  %s8 = inlined_call_operand.vmem [shape: f32[2,1,32], index: 8, kind: input, shape index: {}]
  %s9 = inlined_call_operand.vmem [shape: f32[2,1,32], index: 9, kind: input, shape index: {}]
  %s10 = inlined_call_operand.vmem [shape: f32[2,32,64], index: 10, kind: input, shape index: {}]
  %s11 = inlined_call_operand.vmem [shape: f32[2,1,64], index: 11, kind: input, shape index: {}]
  %s12 = inlined_call_operand.vmem [shape: f32[2,64,32], index: 12, kind: input, shape index: {}]
  %s13 = inlined_call_operand.vmem [shape: f32[2,1,32], index: 13, kind: input, shape index: {}]
  %s14 = inlined_call_operand.vmem [shape: f32[2,1,32], index: 14, kind: input, shape index: {}]
  %s15 = inlined_call_operand.vmem [shape: f32[2,1,32], index: 15, kind: input, shape index: {}]
  %s16 = inlined_call_operand.vmem [shape: f32[32,128], index: 16, kind: input, shape index: {}]
  %s17 = inlined_call_operand.vmem [shape: f32[1,128], index: 17, kind: input, shape index: {}]
  %s18 = inlined_call_operand.vmem [shape: f32[16,128], index: 18, kind: output, shape index: {}]
  %s19 = sld [smem:[#allocation0]]
  $region82: #{qa_forward.1} parent=0
    _
  %s21 = ssub.s32 1, %s19
  %s22 = scalar_select 0, %s21, %s19
  // Predicated region
  $region2: #{qa_forward.1} parent=0 // pred_check
    _
  $region3: #{qa_forward.1} parent=0 // pred_check_branch
    %24 = sbr.rel (0) target = $region5
  $region4: #{qa_forward.1} parent=0 // pred_region
    _
  $region5: #{qa_forward.1} parent=0 // pred_fallthru
    _
  // Predicated region
  $region6: #{qa_forward.1} parent=0 // pred_check
    _
  $region7: #{qa_forward.1} parent=0 // pred_check_branch
    %26 = sbr.rel (0) target = $region9
  $region8: #{qa_forward.1} parent=0 // pred_region
    _
  $region9: #{qa_forward.1} parent=0 // pred_fallthru
    _
  // Predicated region
  $region10: #{qa_forward.1} parent=0 // pred_check
    _
  $region11: #{qa_forward.1} parent=0 // pred_check_branch
    %28 = sbr.rel (0) target = $region13
  $region12: #{qa_forward.1} parent=0 // pred_region
    _
  $region13: #{qa_forward.1} parent=0 // pred_fallthru
    _
  // Predicated region
  $region14: #{qa_forward.1} parent=0 // pred_check
    _
  $region15: #{qa_forward.1} parent=0 // pred_check_branch
    %30 = sbr.rel (0) target = $region17
  $region16: #{qa_forward.1} parent=0 // pred_region
    _
  $region17: #{qa_forward.1} parent=0 // pred_fallthru
    _
  // Predicated region
  $region18: #{qa_forward.1} parent=0 // pred_check
    _
  $region19: #{qa_forward.1} parent=0 // pred_check_branch
    %32 = sbr.rel (0) target = $region21
  $region20: #{qa_forward.1} parent=0 // pred_region
    _
  $region21: #{qa_forward.1} parent=0 // pred_fallthru
    _
  // Predicated region
  $region22: #{qa_forward.1} parent=0 // pred_check
    _
  $region23: #{qa_forward.1} parent=0 // pred_check_branch
    %34 = sbr.rel (0) target = $region25
  $region24: #{qa_forward.1} parent=0 // pred_region
    _
  $region25: #{qa_forward.1} parent=0 // pred_fallthru
    _
  // Predicated region
  $region26: #{qa_forward.1} parent=0 // pred_check
    _
  $region27: #{qa_forward.1} parent=0 // pred_check_branch
    %36 = sbr.rel (0) target = $region29
  $region28: #{qa_forward.1} parent=0 // pred_region
    _
  $region29: #{qa_forward.1} parent=0 // pred_fallthru
    _
  // Predicated region
  $region30: #{qa_forward.1} parent=0 // pred_check
    _
  $region31: #{qa_forward.1} parent=0 // pred_check_branch
    %38 = sbr.rel (0) target = $region33
  $region32: #{qa_forward.1} parent=0 // pred_region
    _
  $region33: #{qa_forward.1} parent=0 // pred_fallthru
    _
  // Predicated region
  $region34: #{qa_forward.1} parent=0 // pred_check
    _
  $region35: #{qa_forward.1} parent=0 // pred_check_branch
    %40 = sbr.rel (0) target = $region37
  $region36: #{qa_forward.1} parent=0 // pred_region
    _
  $region37: #{qa_forward.1} parent=0 // pred_fallthru
    _
  // Predicated region
  $region38: #{qa_forward.1} parent=0 // pred_check
    _
  $region39: #{qa_forward.1} parent=0 // pred_check_branch
    %42 = sbr.rel (0) target = $region41
  $region40: #{qa_forward.1} parent=0 // pred_region
    _
  $region41: #{qa_forward.1} parent=0 // pred_fallthru
    _
  // Predicated region
  $region42: #{qa_forward.1} parent=0 // pred_check
    _
  $region43: #{qa_forward.1} parent=0 // pred_check_branch
    %44 = sbr.rel (0) target = $region45
  $region44: #{qa_forward.1} parent=0 // pred_region
    _
  $region45: #{qa_forward.1} parent=0 // pred_fallthru
    _
  // Predicated region
  $region46: #{qa_forward.1} parent=0 // pred_check
    _
  $region47: #{qa_forward.1} parent=0 // pred_check_branch
    %46 = sbr.rel (0) target = $region49
  $region48: #{qa_forward.1} parent=0 // pred_region
    _
  $region49: #{qa_forward.1} parent=0 // pred_fallthru
    _
  // Predicated region
  $region50: #{qa_forward.1} parent=0 // pred_check
    _
  $region51: #{qa_forward.1} parent=0 // pred_check_branch
    %48 = sbr.rel (0) target = $region53
  $region52: #{qa_forward.1} parent=0 // pred_region
    _
  $region53: #{qa_forward.1} parent=0 // pred_fallthru
    _
  // Predicated region
  $region54: #{qa_forward.1} parent=0 // pred_check
    _
  $region55: #{qa_forward.1} parent=0 // pred_check_branch
    %50 = sbr.rel (0) target = $region57
  $region56: #{qa_forward.1} parent=0 // pred_region
    _
  $region57: #{qa_forward.1} parent=0 // pred_fallthru
    _
  // Predicated region
  $region58: #{qa_forward.1} parent=0 // pred_check
    _
  $region59: #{qa_forward.1} parent=0 // pred_check_branch
    %52 = sbr.rel (0) target = $region61
  $region60: #{qa_forward.1} parent=0 // pred_region
    _
  $region61: #{qa_forward.1} parent=0 // pred_fallthru
    _
  // Predicated region
  $region62: #{qa_forward.1} parent=0 // pred_check
    _
  $region63: #{qa_forward.1} parent=0 // pred_check_branch
    %54 = sbr.rel (0) target = $region65
  $region64: #{qa_forward.1} parent=0 // pred_region
    _
  $region65: #{qa_forward.1} parent=0 // pred_fallthru
    _
  // Predicated region
  $region66: #{qa_forward.1} parent=0 // pred_check
    _
  $region67: #{qa_forward.1} parent=0 // pred_check_branch
    %56 = sbr.rel (0) target = $region69
  $region68: #{qa_forward.1} parent=0 // pred_region
    _
  $region69: #{qa_forward.1} parent=0 // pred_fallthru
    _
  // Predicated region
  $region70: #{qa_forward.1} parent=0 // pred_check
    _
  $region71: #{qa_forward.1} parent=0 // pred_check_branch
    %58 = sbr.rel (0) target = $region73
  $region72: #{qa_forward.1} parent=0 // pred_region
    _
  $region73: #{qa_forward.1} parent=0 // pred_fallthru
    _
  %v59 = vld [vmem:[%s0] sm:$0xff]
  %v60 = vld [vmem:[%s0 + $0x8] sm:$0xff]
  %v61 = vld [vmem:[%s2] sm:$0x1]
  %v62 = vld [vmem:[%s3] sm:$0x1]
  %vm63 = vcmask 261120
  %v64 = vsel %vm63, %v59, 0.0
  %65 = vadd.xlane.f32.xlu0 %v64
  %v66 = vpop.xlane.xlu0 %65
  %v67 = vsel %vm63, %v60, 0.0
  %68 = vadd.xlane.f32.xlu0 %v67
  %v69 = vpop.xlane.xlu0 %68
  %v70 = vrcp.pop 32.0
  %v71 = vmul.f32 32.0, %v70
  %v72 = vsub.f32 1.0, %v71
  %v73 = vmul.f32 %v70, %v72
  %v74 = vadd.f32 %v70, %v73
  %vm75 = vweird.f32 %v70
  %v76 = vsel %vm75, %v70, %v74
  %v77 = vmul.f32 %v66, %v76
  %v78 = vmul.f32 %v69, %v76
  %v79 = vsub.f32 %v59, %v77
  %v80 = vsub.f32 %v60, %v78
  %v81 = vmul.f32 %v79, %v79
  %v82 = vmul.f32 %v80, %v80
  %v83 = vsel %vm63, %v81, 0.0
  %84 = vadd.xlane.f32.xlu0 %v83
  %v85 = vpop.xlane.xlu0 %84
  %v86 = vsel %vm63, %v82, 0.0
  %87 = vadd.xlane.f32.xlu0 %v86
  %v88 = vpop.xlane.xlu0 %87
  %v89 = vmul.f32 %v85, %v76
  %v90 = vmul.f32 %v88, %v76
  %v91 = vadd.f32 %v89, 1e-12
  %v92 = vadd.f32 %v90, 1e-12
  %v93 = vrsqrt.pop %v91
  %v94 = vmul.f32 %v93, %v91
  %v95 = vmul.f32 %v94, %v93
  %v96 = vmul.f32 0.5, %v95
  %v97 = vsub.f32 1.5, %v96
  %v98 = vmul.f32 %v93, %v97
  %vm99 = vweird.f32 %v91
  %vm100 = vweird.f32 %v93
  %vm101 = vmor %vm99, %vm100
  %v102 = vsel %vm101, %v93, %v98
  %v103 = vrsqrt.pop %v92
  %v104 = vmul.f32 %v103, %v92
  %v105 = vmul.f32 %v104, %v103
  %v106 = vmul.f32 0.5, %v105
  %v107 = vsub.f32 1.5, %v106
  %v108 = vmul.f32 %v103, %v107
  %vm109 = vweird.f32 %v92
  %vm110 = vweird.f32 %v103
  %vm111 = vmor %vm109, %vm110
  %v112 = vsel %vm111, %v103, %v108
  %v113 = vmul.f32 %v79, %v102
  %v114 = vmul.f32 %v80, %v112
  %v116 = vperm.slane %v61, 0
  %v118 = vmul.f32 %v113, %v116
  %v119 = vmul.f32 %v114, %v116
  %v121 = vperm.slane %v62, 0
  %v123 = vadd.f32 %v118, %v121
  %v124 = vadd.f32 %v119, %v121
  %v125 = vld [vmem:[%s1] sm:$0x3]
  %v126 = vld [vmem:[%s4] sm:$0xff]
  %v127 = vld [vmem:[%s4 + $0x8] sm:$0xff]
  %v128 = vld [vmem:[%s4 + $0x10] sm:$0xff]
  %v129 = vld [vmem:[%s4 + $0x18] sm:$0xff]
  %v130 = vld [vmem:[%s5] sm:$0x1]
  %v132 = vperm.slane %v130, 0
  %v135 = vsel %vm63, %v123, 0
  %v138 = vsel %vm63, %v124, 0
  %140 = vmatpush.msra.mxu0 0.0
  %141 = vmatpush.msra.mxu0 0.0
  %142 = vmatpush.msra.mxu0 0.0
  %143 = vmatpush.msra.mxu0 0.0
  %144 = vmatpush.msra.mxu0 0.0
  %145 = vmatpush.msra.mxu0 0.0
  %146 = vmatpush.msra.mxu0 0.0
  %147 = vmatpush.msra.mxu0 0.0
  %148 = vmatpush.msra.mxu0 0.0
  %149 = vmatpush.msra.mxu0 0.0
  %150 = vmatpush.msra.mxu0 0.0
  %151 = vmatpush.msra.mxu0 0.0
  %152 = vmatpush.msra.mxu0 %v129
  %153 = vmatpush.msra.mxu0 %v128
  %154 = vmatpush.msra.mxu0 %v127
  %155 = vmatpush.msra.mxu0 %v126
  %156 = vmatmul.f32.gmra.mxu0 %v135
  %v157 = vpop.f32.mrf.mxu0
  %v158 = vadd.f32 %v132, %v157
  %159 = vmatmul.f32.gmra.mxu0 %v138
  %v160 = vpop.f32.mrf.mxu0
  %v161 = vadd.f32 %v132, %v160
  %162 = vdwg.mxu0
  %164 = vrot.lane.b32.xlu0 %v158, 120
  %v165 = vpop.permute.xlu0 %164
  %166 = vrot.lane.b32.xlu0 %v158, 112
  %v167 = vpop.permute.xlu0 %166
  %168 = vrot.lane.b32.xlu0 %v158, 104
  %v169 = vpop.permute.xlu0 %168
  %v170 = vperm.slane %v125, 0
  %171 = vrot.lane.b32.xlu0 %v158, 96
  %v172 = vpop.permute.xlu0 %171
  %vm173 = vcmask 64512
  %v174 = vsel %vm173, %v158, 0
  %v176 = vsel %vm173, %v172, 0
  %178 = vmatpush.xpose.msra.mxu0 0.0
  %179 = vmatpush.xpose.msra.mxu0 0.0
  %180 = vmatpush.xpose.msra.mxu0 0.0
  %181 = vmatpush.xpose.msra.mxu0 0.0
  %182 = vmatpush.xpose.msra.mxu0 0.0
  %183 = vmatpush.xpose.msra.mxu0 0.0
  %184 = vmatpush.xpose.msra.mxu0 0.0
  %185 = vmatpush.xpose.msra.mxu0 0.0
  %186 = vmatpush.xpose.msra.mxu0 0.0
  %187 = vmatpush.xpose.msra.mxu0 0.0
  %188 = vmatpush.xpose.msra.mxu0 0.0
  %189 = vmatpush.xpose.msra.mxu0 0.0
  %190 = vmatpush.xpose.msra.mxu0 0.0
  %191 = vmatpush.xpose.msra.mxu0 0.0
  %192 = vmatpush.xpose.msra.mxu0 0.0
  %193 = vmatpush.xpose.msra.mxu0 %v176
  %194 = vmatmul.f32.gmra.mxu0 %v174
  %v195 = vpop.f32.mrf.mxu0
  %v196 = vadd.f32 %v170, %v195
  %197 = vdwg.mxu0
  %198 = vrot.lane.b32.xlu0 %v165, 96
  %v199 = vpop.permute.xlu0 %198
  %v200 = vsel %vm173, %v165, 0
  %v202 = vsel %vm173, %v199, 0
  %204 = vmatpush.xpose.msra.mxu0 0.0
  %205 = vmatpush.xpose.msra.mxu0 0.0
  %206 = vmatpush.xpose.msra.mxu0 0.0
  %207 = vmatpush.xpose.msra.mxu0 0.0
  %208 = vmatpush.xpose.msra.mxu0 0.0
  %209 = vmatpush.xpose.msra.mxu0 0.0
  %210 = vmatpush.xpose.msra.mxu0 0.0
  %211 = vmatpush.xpose.msra.mxu0 0.0
  %212 = vmatpush.xpose.msra.mxu0 0.0
  %213 = vmatpush.xpose.msra.mxu0 0.0
  %214 = vmatpush.xpose.msra.mxu0 0.0
  %215 = vmatpush.xpose.msra.mxu0 0.0
  %216 = vmatpush.xpose.msra.mxu0 0.0
  %217 = vmatpush.xpose.msra.mxu0 0.0
  %218 = vmatpush.xpose.msra.mxu0 0.0
  %219 = vmatpush.xpose.msra.mxu0 %v202
  %220 = vmatmul.f32.gmra.mxu0 %v200
  %v221 = vpop.f32.mrf.mxu0
  %v222 = vadd.f32 %v170, %v221
  %223 = vdwg.mxu0
  %224 = vrot.lane.b32.xlu0 %v167, 96
  %v225 = vpop.permute.xlu0 %224
  %v226 = vsel %vm173, %v167, 0
  %v228 = vsel %vm173, %v225, 0
  %230 = vmatpush.xpose.msra.mxu0 0.0
  %231 = vmatpush.xpose.msra.mxu0 0.0
  %232 = vmatpush.xpose.msra.mxu0 0.0
  %233 = vmatpush.xpose.msra.mxu0 0.0
  %234 = vmatpush.xpose.msra.mxu0 0.0
  %235 = vmatpush.xpose.msra.mxu0 0.0
  %236 = vmatpush.xpose.msra.mxu0 0.0
  %237 = vmatpush.xpose.msra.mxu0 0.0
  %238 = vmatpush.xpose.msra.mxu0 0.0
  %239 = vmatpush.xpose.msra.mxu0 0.0
  %240 = vmatpush.xpose.msra.mxu0 0.0
  %241 = vmatpush.xpose.msra.mxu0 0.0
  %242 = vmatpush.xpose.msra.mxu0 0.0
  %243 = vmatpush.xpose.msra.mxu0 0.0
  %244 = vmatpush.xpose.msra.mxu0 0.0
  %245 = vmatpush.xpose.msra.mxu0 %v228
  %246 = vmatmul.f32.gmra.mxu0 %v226
  %v247 = vpop.f32.mrf.mxu0
  %v248 = vadd.f32 %v170, %v247
  %249 = vdwg.mxu0
  %250 = vrot.lane.b32.xlu0 %v169, 96
  %v251 = vpop.permute.xlu0 %250
  %v252 = vsel %vm173, %v169, 0
  %v254 = vsel %vm173, %v251, 0
  %256 = vmatpush.xpose.msra.mxu0 0.0
  %257 = vmatpush.xpose.msra.mxu0 0.0
  %258 = vmatpush.xpose.msra.mxu0 0.0
  %259 = vmatpush.xpose.msra.mxu0 0.0
  %260 = vmatpush.xpose.msra.mxu0 0.0
  %261 = vmatpush.xpose.msra.mxu0 0.0
  %262 = vmatpush.xpose.msra.mxu0 0.0
  %263 = vmatpush.xpose.msra.mxu0 0.0
  %264 = vmatpush.xpose.msra.mxu0 0.0
  %265 = vmatpush.xpose.msra.mxu0 0.0
  %266 = vmatpush.xpose.msra.mxu0 0.0
  %267 = vmatpush.xpose.msra.mxu0 0.0
  %268 = vmatpush.xpose.msra.mxu0 0.0
  %269 = vmatpush.xpose.msra.mxu0 0.0
  %270 = vmatpush.xpose.msra.mxu0 0.0
  %271 = vmatpush.xpose.msra.mxu0 %v254
  %272 = vmatmul.f32.gmra.mxu0 %v252
  %v273 = vpop.f32.mrf.mxu0
  %v274 = vadd.f32 %v170, %v273
  %275 = vdwg.mxu0
  %v276 = vsel %vm173, %v196, -inf
  %277 = vmax.xlane.f32.xlu0 %v276
  %v278 = vpop.xlane.xlu0 %277
  %v279 = vsel %vm173, %v222, -inf
  %280 = vmax.xlane.f32.xlu0 %v279
  %v281 = vpop.xlane.xlu0 %280
  %v282 = vsel %vm173, %v248, -inf
  %283 = vmax.xlane.f32.xlu0 %v282
  %v284 = vpop.xlane.xlu0 %283
  %v285 = vsel %vm173, %v274, -inf
  %286 = vmax.xlane.f32.xlu0 %v285
  %v287 = vpop.xlane.xlu0 %286
  %v288 = vsub.f32 %v196, %v278
  %v289 = vsub.f32 %v222, %v281
  %v290 = vsub.f32 %v248, %v284
  %v291 = vsub.f32 %v274, %v287
  %v292 = vmul.f32 %v288, 1.442695
  %v293 = vpow.pop %v292
  %v294 = vmul.f32 %v289, 1.442695
  %v295 = vpow.pop %v294
  %v296 = vmul.f32 %v290, 1.442695
  %v297 = vpow.pop %v296
  %v298 = vmul.f32 %v291, 1.442695
  %v299 = vpow.pop %v298
  %v300 = vsel %vm173, %v293, 0.0
  %301 = vadd.xlane.f32.xlu0 %v300
  %v302 = vpop.xlane.xlu0 %301
  %v303 = vsel %vm173, %v295, 0.0
  %304 = vadd.xlane.f32.xlu0 %v303
  %v305 = vpop.xlane.xlu0 %304
  %v306 = vsel %vm173, %v297, 0.0
  %307 = vadd.xlane.f32.xlu0 %v306
  %v308 = vpop.xlane.xlu0 %307
  %v309 = vsel %vm173, %v299, 0.0
  %310 = vadd.xlane.f32.xlu0 %v309
  %v311 = vpop.xlane.xlu0 %310
  %v312 = vrcp.pop %v302
  %v313 = vrcp.pop %v305
  %v314 = vrcp.pop %v308
  %v315 = vrcp.pop %v311
  %v316 = vmul.f32 %v293, %v312
  %v317 = vmul.f32 %v295, %v313
  %v318 = vmul.f32 %v297, %v314
  %v319 = vmul.f32 %v299, %v315
  %320 = vrot.lane.b32.xlu0 %v158, 64
  %v321 = vpop.permute.xlu0 %320
  %v324 = vsel %vm173, %v316, 0
  %326 = vmatpush.msra.mxu0 0.0
  %327 = vmatpush.msra.mxu0 0.0
  %328 = vmatpush.msra.mxu0 0.0
  %329 = vmatpush.msra.mxu0 0.0
  %330 = vmatpush.msra.mxu0 0.0
  %331 = vmatpush.msra.mxu0 0.0
  %332 = vmatpush.msra.mxu0 0.0
  %333 = vmatpush.msra.mxu0 0.0
  %334 = vmatpush.msra.mxu0 0.0
  %335 = vmatpush.msra.mxu0 0.0
  %336 = vmatpush.msra.mxu0 0.0
  %337 = vmatpush.msra.mxu0 0.0
  %338 = vmatpush.msra.mxu0 0.0
  %339 = vmatpush.msra.mxu0 0.0
  %340 = vmatpush.msra.mxu0 0.0
  %341 = vmatpush.msra.mxu0 %v321
  %342 = vmatmul.f32.gmra.mxu0 %v324
  %v343 = vpop.f32.mrf.mxu0
  %v344 = vadd.f32 0.0, %v343
  %345 = vdwg.mxu0
  %346 = vrot.lane.b32.xlu0 %v165, 64
  %v347 = vpop.permute.xlu0 %346
  %v350 = vsel %vm173, %v317, 0
  %352 = vmatpush.msra.mxu0 0.0
  %353 = vmatpush.msra.mxu0 0.0
  %354 = vmatpush.msra.mxu0 0.0
  %355 = vmatpush.msra.mxu0 0.0
  %356 = vmatpush.msra.mxu0 0.0
  %357 = vmatpush.msra.mxu0 0.0
  %358 = vmatpush.msra.mxu0 0.0
  %359 = vmatpush.msra.mxu0 0.0
  %360 = vmatpush.msra.mxu0 0.0
  %361 = vmatpush.msra.mxu0 0.0
  %362 = vmatpush.msra.mxu0 0.0
  %363 = vmatpush.msra.mxu0 0.0
  %364 = vmatpush.msra.mxu0 0.0
  %365 = vmatpush.msra.mxu0 0.0
  %366 = vmatpush.msra.mxu0 0.0
  %367 = vmatpush.msra.mxu0 %v347
  %368 = vmatmul.f32.gmra.mxu0 %v350
  %v369 = vpop.f32.mrf.mxu0
  %v370 = vadd.f32 0.0, %v369
  %371 = vdwg.mxu0
  %372 = vrot.lane.b32.xlu0 %v167, 64
  %v373 = vpop.permute.xlu0 %372
  %v376 = vsel %vm173, %v318, 0
  %378 = vmatpush.msra.mxu0 0.0
  %379 = vmatpush.msra.mxu0 0.0
  %380 = vmatpush.msra.mxu0 0.0
  %381 = vmatpush.msra.mxu0 0.0
  %382 = vmatpush.msra.mxu0 0.0
  %383 = vmatpush.msra.mxu0 0.0
  %384 = vmatpush.msra.mxu0 0.0
  %385 = vmatpush.msra.mxu0 0.0
  %386 = vmatpush.msra.mxu0 0.0
  %387 = vmatpush.msra.mxu0 0.0
  %388 = vmatpush.msra.mxu0 0.0
  %389 = vmatpush.msra.mxu0 0.0
  %390 = vmatpush.msra.mxu0 0.0
  %391 = vmatpush.msra.mxu0 0.0
  %392 = vmatpush.msra.mxu0 0.0
  %393 = vmatpush.msra.mxu0 %v373
  %394 = vmatmul.f32.gmra.mxu0 %v376
  %v395 = vpop.f32.mrf.mxu0
  %v396 = vadd.f32 0.0, %v395
  %397 = vdwg.mxu0
  %398 = vrot.lane.b32.xlu0 %v169, 64
  %v399 = vpop.permute.xlu0 %398
  %v402 = vsel %vm173, %v319, 0
  %404 = vmatpush.msra.mxu0 0.0
  %405 = vmatpush.msra.mxu0 0.0
  %406 = vmatpush.msra.mxu0 0.0
  %407 = vmatpush.msra.mxu0 0.0
  %408 = vmatpush.msra.mxu0 0.0
  %409 = vmatpush.msra.mxu0 0.0
  %410 = vmatpush.msra.mxu0 0.0
  %411 = vmatpush.msra.mxu0 0.0
  %412 = vmatpush.msra.mxu0 0.0
  %413 = vmatpush.msra.mxu0 0.0
  %414 = vmatpush.msra.mxu0 0.0
  %415 = vmatpush.msra.mxu0 0.0
  %416 = vmatpush.msra.mxu0 0.0
  %417 = vmatpush.msra.mxu0 0.0
  %418 = vmatpush.msra.mxu0 0.0
  %419 = vmatpush.msra.mxu0 %v399
  %420 = vmatmul.f32.gmra.mxu0 %v402
  %v421 = vpop.f32.mrf.mxu0
  %v422 = vadd.f32 0.0, %v421
  %423 = vdwg.mxu0
  %425 = vrot.lane.b32.xlu0 %v370, 8
  %v426 = vpop.permute.xlu0 %425
  %429 = vrot.lane.b32.xlu0 %v396, 16
  %v430 = vpop.permute.xlu0 %429
  %433 = vrot.lane.b32.xlu0 %v422, 24
  %v434 = vpop.permute.xlu0 %433
  %v436 = vsel %vm173, %v344, %v426
  %vm437 = vcmask 130048
  %v438 = vsel %vm437, %v436, %v430
  %vm439 = vcmask 195584
  %v440 = vsel %vm439, %v438, %v434
  %442 = vrot.lane.b32.xlu0 %v161, 120
  %v443 = vpop.permute.xlu0 %442
  %444 = vrot.lane.b32.xlu0 %v161, 112
  %v445 = vpop.permute.xlu0 %444
  %446 = vrot.lane.b32.xlu0 %v161, 104
  %v447 = vpop.permute.xlu0 %446
  %v448 = vperm.slane %v125, 1
  %449 = vrot.lane.b32.xlu0 %v161, 96
  %v450 = vpop.permute.xlu0 %449
  %v451 = vsel %vm173, %v161, 0
  %v453 = vsel %vm173, %v450, 0
  %455 = vmatpush.xpose.msra.mxu0 0.0
  %456 = vmatpush.xpose.msra.mxu0 0.0
  %457 = vmatpush.xpose.msra.mxu0 0.0
  %458 = vmatpush.xpose.msra.mxu0 0.0
  %459 = vmatpush.xpose.msra.mxu0 0.0
  %460 = vmatpush.xpose.msra.mxu0 0.0
  %461 = vmatpush.xpose.msra.mxu0 0.0
  %462 = vmatpush.xpose.msra.mxu0 0.0
  %463 = vmatpush.xpose.msra.mxu0 0.0
  %464 = vmatpush.xpose.msra.mxu0 0.0
  %465 = vmatpush.xpose.msra.mxu0 0.0
  %466 = vmatpush.xpose.msra.mxu0 0.0
  %467 = vmatpush.xpose.msra.mxu0 0.0
  %468 = vmatpush.xpose.msra.mxu0 0.0
  %469 = vmatpush.xpose.msra.mxu0 0.0
  %470 = vmatpush.xpose.msra.mxu0 %v453
  %471 = vmatmul.f32.gmra.mxu0 %v451
  %v472 = vpop.f32.mrf.mxu0
  %v473 = vadd.f32 %v448, %v472
  %474 = vdwg.mxu0
  %475 = vrot.lane.b32.xlu0 %v443, 96
  %v476 = vpop.permute.xlu0 %475
  %v477 = vsel %vm173, %v443, 0
  %v479 = vsel %vm173, %v476, 0
  %481 = vmatpush.xpose.msra.mxu0 0.0
  %482 = vmatpush.xpose.msra.mxu0 0.0
  %483 = vmatpush.xpose.msra.mxu0 0.0
  %484 = vmatpush.xpose.msra.mxu0 0.0
  %485 = vmatpush.xpose.msra.mxu0 0.0
  %486 = vmatpush.xpose.msra.mxu0 0.0
  %487 = vmatpush.xpose.msra.mxu0 0.0
  %488 = vmatpush.xpose.msra.mxu0 0.0
  %489 = vmatpush.xpose.msra.mxu0 0.0
  %490 = vmatpush.xpose.msra.mxu0 0.0
  %491 = vmatpush.xpose.msra.mxu0 0.0
  %492 = vmatpush.xpose.msra.mxu0 0.0
  %493 = vmatpush.xpose.msra.mxu0 0.0
  %494 = vmatpush.xpose.msra.mxu0 0.0
  %495 = vmatpush.xpose.msra.mxu0 0.0
  %496 = vmatpush.xpose.msra.mxu0 %v479
  %497 = vmatmul.f32.gmra.mxu0 %v477
  %v498 = vpop.f32.mrf.mxu0
  %v499 = vadd.f32 %v448, %v498
  %500 = vdwg.mxu0
  %501 = vrot.lane.b32.xlu0 %v445, 96
  %v502 = vpop.permute.xlu0 %501
  %v503 = vsel %vm173, %v445, 0
  %v505 = vsel %vm173, %v502, 0
  %507 = vmatpush.xpose.msra.mxu0 0.0
  %508 = vmatpush.xpose.msra.mxu0 0.0
  %509 = vmatpush.xpose.msra.mxu0 0.0
  %510 = vmatpush.xpose.msra.mxu0 0.0
  %511 = vmatpush.xpose.msra.mxu0 0.0
  %512 = vmatpush.xpose.msra.mxu0 0.0
  %513 = vmatpush.xpose.msra.mxu0 0.0
  %514 = vmatpush.xpose.msra.mxu0 0.0
  %515 = vmatpush.xpose.msra.mxu0 0.0
  %516 = vmatpush.xpose.msra.mxu0 0.0
  %517 = vmatpush.xpose.msra.mxu0 0.0
  %518 = vmatpush.xpose.msra.mxu0 0.0
  %519 = vmatpush.xpose.msra.mxu0 0.0
  %520 = vmatpush.xpose.msra.mxu0 0.0
  %521 = vmatpush.xpose.msra.mxu0 0.0
  %522 = vmatpush.xpose.msra.mxu0 %v505
  %523 = vmatmul.f32.gmra.mxu0 %v503
  %v524 = vpop.f32.mrf.mxu0
  %v525 = vadd.f32 %v448, %v524
  %526 = vdwg.mxu0
  %527 = vrot.lane.b32.xlu0 %v447, 96
  %v528 = vpop.permute.xlu0 %527
  %v529 = vsel %vm173, %v447, 0
  %v531 = vsel %vm173, %v528, 0
  %533 = vmatpush.xpose.msra.mxu0 0.0
  %534 = vmatpush.xpose.msra.mxu0 0.0
  %535 = vmatpush.xpose.msra.mxu0 0.0
  %536 = vmatpush.xpose.msra.mxu0 0.0
  %537 = vmatpush.xpose.msra.mxu0 0.0
  %538 = vmatpush.xpose.msra.mxu0 0.0
  %539 = vmatpush.xpose.msra.mxu0 0.0
  %540 = vmatpush.xpose.msra.mxu0 0.0
  %541 = vmatpush.xpose.msra.mxu0 0.0
  %542 = vmatpush.xpose.msra.mxu0 0.0
  %543 = vmatpush.xpose.msra.mxu0 0.0
  %544 = vmatpush.xpose.msra.mxu0 0.0
  %545 = vmatpush.xpose.msra.mxu0 0.0
  %546 = vmatpush.xpose.msra.mxu0 0.0
  %547 = vmatpush.xpose.msra.mxu0 0.0
  %548 = vmatpush.xpose.msra.mxu0 %v531
  %549 = vmatmul.f32.gmra.mxu0 %v529
  %v550 = vpop.f32.mrf.mxu0
  %v551 = vadd.f32 %v448, %v550
  %552 = vdwg.mxu0
  %v553 = vsel %vm173, %v473, -inf
  %554 = vmax.xlane.f32.xlu0 %v553
  %v555 = vpop.xlane.xlu0 %554
  %v556 = vsel %vm173, %v499, -inf
  %557 = vmax.xlane.f32.xlu0 %v556
  %v558 = vpop.xlane.xlu0 %557
  %v559 = vsel %vm173, %v525, -inf
  %560 = vmax.xlane.f32.xlu0 %v559
  %v561 = vpop.xlane.xlu0 %560
  %v562 = vsel %vm173, %v551, -inf
  %563 = vmax.xlane.f32.xlu0 %v562
  %v564 = vpop.xlane.xlu0 %563
  %v565 = vsub.f32 %v473, %v555
  %v566 = vsub.f32 %v499, %v558
  %v567 = vsub.f32 %v525, %v561
  %v568 = vsub.f32 %v551, %v564
  %v569 = vmul.f32 %v565, 1.442695
  %v570 = vpow.pop %v569
  %v571 = vmul.f32 %v566, 1.442695
  %v572 = vpow.pop %v571
  %v573 = vmul.f32 %v567, 1.442695
  %v574 = vpow.pop %v573
  %v575 = vmul.f32 %v568, 1.442695
  %v576 = vpow.pop %v575
  %v577 = vsel %vm173, %v570, 0.0
  %578 = vadd.xlane.f32.xlu0 %v577
  %v579 = vpop.xlane.xlu0 %578
  %v580 = vsel %vm173, %v572, 0.0
  %581 = vadd.xlane.f32.xlu0 %v580
  %v582 = vpop.xlane.xlu0 %581
  %v583 = vsel %vm173, %v574, 0.0
  %584 = vadd.xlane.f32.xlu0 %v583
  %v585 = vpop.xlane.xlu0 %584
  %v586 = vsel %vm173, %v576, 0.0
  %587 = vadd.xlane.f32.xlu0 %v586
  %v588 = vpop.xlane.xlu0 %587
  %v589 = vrcp.pop %v579
  %v590 = vrcp.pop %v582
  %v591 = vrcp.pop %v585
  %v592 = vrcp.pop %v588
  %v593 = vmul.f32 %v570, %v589
  %v594 = vmul.f32 %v572, %v590
  %v595 = vmul.f32 %v574, %v591
  %v596 = vmul.f32 %v576, %v592
  %597 = vrot.lane.b32.xlu0 %v161, 64
  %v598 = vpop.permute.xlu0 %597
  %v601 = vsel %vm173, %v593, 0
  %603 = vmatpush.msra.mxu0 0.0
  %604 = vmatpush.msra.mxu0 0.0
  %605 = vmatpush.msra.mxu0 0.0
  %606 = vmatpush.msra.mxu0 0.0
  %607 = vmatpush.msra.mxu0 0.0
  %608 = vmatpush.msra.mxu0 0.0
  %609 = vmatpush.msra.mxu0 0.0
  %610 = vmatpush.msra.mxu0 0.0
  %611 = vmatpush.msra.mxu0 0.0
  %612 = vmatpush.msra.mxu0 0.0
  %613 = vmatpush.msra.mxu0 0.0
  %614 = vmatpush.msra.mxu0 0.0
  %615 = vmatpush.msra.mxu0 0.0
  %616 = vmatpush.msra.mxu0 0.0
  %617 = vmatpush.msra.mxu0 0.0
  %618 = vmatpush.msra.mxu0 %v598
  %619 = vmatmul.f32.gmra.mxu0 %v601
  %v620 = vpop.f32.mrf.mxu0
  %v621 = vadd.f32 0.0, %v620
  %622 = vdwg.mxu0
  %623 = vrot.lane.b32.xlu0 %v443, 64
  %v624 = vpop.permute.xlu0 %623
  %v627 = vsel %vm173, %v594, 0
  %629 = vmatpush.msra.mxu0 0.0
  %630 = vmatpush.msra.mxu0 0.0
  %631 = vmatpush.msra.mxu0 0.0
  %632 = vmatpush.msra.mxu0 0.0
  %633 = vmatpush.msra.mxu0 0.0
  %634 = vmatpush.msra.mxu0 0.0
  %635 = vmatpush.msra.mxu0 0.0
  %636 = vmatpush.msra.mxu0 0.0
  %637 = vmatpush.msra.mxu0 0.0
  %638 = vmatpush.msra.mxu0 0.0
  %639 = vmatpush.msra.mxu0 0.0
  %640 = vmatpush.msra.mxu0 0.0
  %641 = vmatpush.msra.mxu0 0.0
  %642 = vmatpush.msra.mxu0 0.0
  %643 = vmatpush.msra.mxu0 0.0
  %644 = vmatpush.msra.mxu0 %v624
  %645 = vmatmul.f32.gmra.mxu0 %v627
  %v646 = vpop.f32.mrf.mxu0
  %v647 = vadd.f32 0.0, %v646
  %648 = vdwg.mxu0
  %649 = vrot.lane.b32.xlu0 %v445, 64
  %v650 = vpop.permute.xlu0 %649
  %v653 = vsel %vm173, %v595, 0
  %655 = vmatpush.msra.mxu0 0.0
  %656 = vmatpush.msra.mxu0 0.0
  %657 = vmatpush.msra.mxu0 0.0
  %658 = vmatpush.msra.mxu0 0.0
  %659 = vmatpush.msra.mxu0 0.0
  %660 = vmatpush.msra.mxu0 0.0
  %661 = vmatpush.msra.mxu0 0.0
  %662 = vmatpush.msra.mxu0 0.0
  %663 = vmatpush.msra.mxu0 0.0
  %664 = vmatpush.msra.mxu0 0.0
  %665 = vmatpush.msra.mxu0 0.0
  %666 = vmatpush.msra.mxu0 0.0
  %667 = vmatpush.msra.mxu0 0.0
  %668 = vmatpush.msra.mxu0 0.0
  %669 = vmatpush.msra.mxu0 0.0
  %670 = vmatpush.msra.mxu0 %v650
  %671 = vmatmul.f32.gmra.mxu0 %v653
  %v672 = vpop.f32.mrf.mxu0
  %v673 = vadd.f32 0.0, %v672
  %674 = vdwg.mxu0
  %675 = vrot.lane.b32.xlu0 %v447, 64
  %v676 = vpop.permute.xlu0 %675
  %v679 = vsel %vm173, %v596, 0
  %681 = vmatpush.msra.mxu0 0.0
  %682 = vmatpush.msra.mxu0 0.0
  %683 = vmatpush.msra.mxu0 0.0
  %684 = vmatpush.msra.mxu0 0.0
  %685 = vmatpush.msra.mxu0 0.0
  %686 = vmatpush.msra.mxu0 0.0
  %687 = vmatpush.msra.mxu0 0.0
  %688 = vmatpush.msra.mxu0 0.0
  %689 = vmatpush.msra.mxu0 0.0
  %690 = vmatpush.msra.mxu0 0.0
  %691 = vmatpush.msra.mxu0 0.0
  %692 = vmatpush.msra.mxu0 0.0
  %693 = vmatpush.msra.mxu0 0.0
  %694 = vmatpush.msra.mxu0 0.0
  %695 = vmatpush.msra.mxu0 0.0
  %696 = vmatpush.msra.mxu0 %v676
  %697 = vmatmul.f32.gmra.mxu0 %v679
  %v698 = vpop.f32.mrf.mxu0
  %v699 = vadd.f32 0.0, %v698
  %700 = vdwg.mxu0
  %702 = vrot.lane.b32.xlu0 %v647, 8
  %v703 = vpop.permute.xlu0 %702
  %706 = vrot.lane.b32.xlu0 %v673, 16
  %v707 = vpop.permute.xlu0 %706
  %710 = vrot.lane.b32.xlu0 %v699, 24
  %v711 = vpop.permute.xlu0 %710
  %v713 = vsel %vm173, %v621, %v703
  %v714 = vsel %vm437, %v713, %v707
  %v715 = vsel %vm439, %v714, %v711
  %v716 = vld [vmem:[%s6] sm:$0xff]
  %v717 = vld [vmem:[%s6 + $0x8] sm:$0xff]
  %v718 = vld [vmem:[%s6 + $0x10] sm:$0xff]
  %v719 = vld [vmem:[%s6 + $0x18] sm:$0xff]
  %v720 = vld [vmem:[%s7] sm:$0x1]
  %v722 = vperm.slane %v720, 0
  %v725 = vsel %vm63, %v440, 0
  %v728 = vsel %vm63, %v715, 0
  %730 = vmatpush.msra.mxu0 0.0
  %731 = vmatpush.msra.mxu0 0.0
  %732 = vmatpush.msra.mxu0 0.0
  %733 = vmatpush.msra.mxu0 0.0
  %734 = vmatpush.msra.mxu0 0.0
  %735 = vmatpush.msra.mxu0 0.0
  %736 = vmatpush.msra.mxu0 0.0
  %737 = vmatpush.msra.mxu0 0.0
  %738 = vmatpush.msra.mxu0 0.0
  %739 = vmatpush.msra.mxu0 0.0
  %740 = vmatpush.msra.mxu0 0.0
  %741 = vmatpush.msra.mxu0 0.0
  %742 = vmatpush.msra.mxu0 %v719
  %743 = vmatpush.msra.mxu0 %v718
  %744 = vmatpush.msra.mxu0 %v717
  %745 = vmatpush.msra.mxu0 %v716
  %746 = vmatmul.f32.gmra.mxu0 %v725
  %v747 = vpop.f32.mrf.mxu0
  %v748 = vadd.f32 %v722, %v747
  %749 = vmatmul.f32.gmra.mxu0 %v728
  %v750 = vpop.f32.mrf.mxu0
  %v751 = vadd.f32 %v722, %v750
  %752 = vdwg.mxu0
  %v753 = vadd.f32 %v123, %v748
  %v754 = vadd.f32 %v124, %v751
  %v755 = vld [vmem:[%s8] sm:$0x1]
  %v756 = vld [vmem:[%s9] sm:$0x1]
  %v757 = vsel %vm63, %v753, 0.0
  %758 = vadd.xlane.f32.xlu0 %v757
  %v759 = vpop.xlane.xlu0 %758
  %v760 = vsel %vm63, %v754, 0.0
  %761 = vadd.xlane.f32.xlu0 %v760
  %v762 = vpop.xlane.xlu0 %761
  %v763 = vmul.f32 %v759, %v76
  %v764 = vmul.f32 %v762, %v76
  %v765 = vsub.f32 %v753, %v763
  %v766 = vsub.f32 %v754, %v764
  %v767 = vmul.f32 %v765, %v765
  %v768 = vmul.f32 %v766, %v766
  %v769 = vsel %vm63, %v767, 0.0
  %770 = vadd.xlane.f32.xlu0 %v769
  %v771 = vpop.xlane.xlu0 %770
  %v772 = vsel %vm63, %v768, 0.0
  %773 = vadd.xlane.f32.xlu0 %v772
  %v774 = vpop.xlane.xlu0 %773
  %v775 = vmul.f32 %v771, %v76
  %v776 = vmul.f32 %v774, %v76
  %v777 = vadd.f32 %v775, 1e-12
  %v778 = vadd.f32 %v776, 1e-12
  %v779 = vrsqrt.pop %v777
  %v780 = vmul.f32 %v779, %v777
  %v781 = vmul.f32 %v780, %v779
  %v782 = vmul.f32 0.5, %v781
  %v783 = vsub.f32 1.5, %v782
  %v784 = vmul.f32 %v779, %v783
  %vm785 = vweird.f32 %v777
  %vm786 = vweird.f32 %v779
  %vm787 = vmor %vm785, %vm786
  %v788 = vsel %vm787, %v779, %v784
  %v789 = vrsqrt.pop %v778
  %v790 = vmul.f32 %v789, %v778
  %v791 = vmul.f32 %v790, %v789
  %v792 = vmul.f32 0.5, %v791
  %v793 = vsub.f32 1.5, %v792
  %v794 = vmul.f32 %v789, %v793
  %vm795 = vweird.f32 %v778
  %vm796 = vweird.f32 %v789
  %vm797 = vmor %vm795, %vm796
  %v798 = vsel %vm797, %v789, %v794
  %v799 = vmul.f32 %v765, %v788
  %v800 = vmul.f32 %v766, %v798
  %v802 = vperm.slane %v755, 0
  %v804 = vmul.f32 %v799, %v802
  %v805 = vmul.f32 %v800, %v802
  %v807 = vperm.slane %v756, 0
  %v809 = vadd.f32 %v804, %v807
  %v810 = vadd.f32 %v805, %v807
  %v811 = vld [vmem:[%s10] sm:$0xff]
  %v812 = vld [vmem:[%s10 + $0x8] sm:$0xff]
  %v813 = vld [vmem:[%s10 + $0x10] sm:$0xff]
  %v814 = vld [vmem:[%s10 + $0x18] sm:$0xff]
  %v815 = vld [vmem:[%s11] sm:$0x1]
  %v817 = vperm.slane %v815, 0
  %v820 = vsel %vm63, %v809, 0
  %v823 = vsel %vm63, %v810, 0
  %825 = vmatpush.msra.mxu0 0.0
  %826 = vmatpush.msra.mxu0 0.0
  %827 = vmatpush.msra.mxu0 0.0
  %828 = vmatpush.msra.mxu0 0.0
  %829 = vmatpush.msra.mxu0 0.0
  %830 = vmatpush.msra.mxu0 0.0
  %831 = vmatpush.msra.mxu0 0.0
  %832 = vmatpush.msra.mxu0 0.0
  %833 = vmatpush.msra.mxu0 0.0
  %834 = vmatpush.msra.mxu0 0.0
  %835 = vmatpush.msra.mxu0 0.0
  %836 = vmatpush.msra.mxu0 0.0
  %837 = vmatpush.msra.mxu0 %v814
  %838 = vmatpush.msra.mxu0 %v813
  %839 = vmatpush.msra.mxu0 %v812
  %840 = vmatpush.msra.mxu0 %v811
  %841 = vmatmul.f32.gmra.mxu0 %v820
  %v842 = vpop.f32.mrf.mxu0
  %v843 = vadd.f32 %v817, %v842
  %844 = vmatmul.f32.gmra.mxu0 %v823
  %v845 = vpop.f32.mrf.mxu0
  %v846 = vadd.f32 %v817, %v845
  %847 = vdwg.mxu0
  %v848 = vmul.f32 %v843, %v843
  %v849 = vmul.f32 %v846, %v846
  %v850 = vmul.f32 %v843, %v848
  %v851 = vmul.f32 %v846, %v849
  %v852 = vmul.f32 %v850, 0.044715
  %v853 = vmul.f32 %v851, 0.044715
  %v854 = vadd.f32 %v843, %v852
  %v855 = vadd.f32 %v846, %v853
  %v856 = vmul.f32 %v854, 0.7978846
  %v857 = vmul.f32 %v855, 0.7978846
  %v858 = vtanh.pop %v856
  %v859 = vtanh.pop %v857
  %v860 = vadd.f32 %v858, 1.0
  %v861 = vadd.f32 %v859, 1.0
  %v862 = vmul.f32 %v860, 0.5
  %v863 = vmul.f32 %v861, 0.5
  %v864 = vmul.f32 %v843, %v862
  %v865 = vmul.f32 %v846, %v863
  %v866 = vld [vmem:[%s12] sm:$0xff]
  %v867 = vld [vmem:[%s12 + $0x8] sm:$0xff]
  %v868 = vld [vmem:[%s12 + $0x10] sm:$0xff]
  %v869 = vld [vmem:[%s12 + $0x18] sm:$0xff]
  %v870 = vld [vmem:[%s12 + $0x20] sm:$0xff]
  %v871 = vld [vmem:[%s12 + $0x28] sm:$0xff]
  %v872 = vld [vmem:[%s12 + $0x30] sm:$0xff]
  %v873 = vld [vmem:[%s12 + $0x38] sm:$0xff]
  %v874 = vld [vmem:[%s13] sm:$0x1]
  %v876 = vperm.slane %v874, 0
  %vm878 = vcmask 523264
  %v880 = vsel %vm878, %v864, 0
  %v883 = vsel %vm878, %v865, 0
  %885 = vmatpush.msra.mxu0 0.0
  %886 = vmatpush.msra.mxu0 0.0
  %887 = vmatpush.msra.mxu0 0.0
  %888 = vmatpush.msra.mxu0 0.0
  %889 = vmatpush.msra.mxu0 0.0
  %890 = vmatpush.msra.mxu0 0.0
  %891 = vmatpush.msra.mxu0 0.0
  %892 = vmatpush.msra.mxu0 0.0
  %893 = vmatpush.msra.mxu0 %v873
  %894 = vmatpush.msra.mxu0 %v872
  %895 = vmatpush.msra.mxu0 %v871
  %896 = vmatpush.msra.mxu0 %v870
  %897 = vmatpush.msra.mxu0 %v869
  %898 = vmatpush.msra.mxu0 %v868
  %899 = vmatpush.msra.mxu0 %v867
  %900 = vmatpush.msra.mxu0 %v866
  %901 = vmatmul.f32.gmra.mxu0 %v880
  %v902 = vpop.f32.mrf.mxu0
  %v903 = vadd.f32 %v876, %v902
  %904 = vmatmul.f32.gmra.mxu0 %v883
  %v905 = vpop.f32.mrf.mxu0
  %v906 = vadd.f32 %v876, %v905
  %907 = vdwg.mxu0
  %v908 = vadd.f32 %v809, %v903
  %v909 = vadd.f32 %v810, %v906
  %v910 = vld [vmem:[%s14] sm:$0x1]
  %v911 = vld [vmem:[%s15] sm:$0x1]
  %v912 = vsel %vm63, %v908, 0.0
  %913 = vadd.xlane.f32.xlu0 %v912
  %v914 = vpop.xlane.xlu0 %913
  %v915 = vsel %vm63, %v909, 0.0
  %916 = vadd.xlane.f32.xlu0 %v915
  %v917 = vpop.xlane.xlu0 %916
  %v918 = vmul.f32 %v914, %v76
  %v919 = vmul.f32 %v917, %v76
  %v920 = vsub.f32 %v908, %v918
  %v921 = vsub.f32 %v909, %v919
  %v922 = vmul.f32 %v920, %v920
  %v923 = vmul.f32 %v921, %v921
  %v924 = vsel %vm63, %v922, 0.0
  %925 = vadd.xlane.f32.xlu0 %v924
  %v926 = vpop.xlane.xlu0 %925
  %v927 = vsel %vm63, %v923, 0.0
  %928 = vadd.xlane.f32.xlu0 %v927
  %v929 = vpop.xlane.xlu0 %928
  %v930 = vmul.f32 %v926, %v76
  %v931 = vmul.f32 %v929, %v76
  %v932 = vadd.f32 %v930, 1e-12
  %v933 = vadd.f32 %v931, 1e-12
  %v934 = vrsqrt.pop %v932
  %v935 = vmul.f32 %v934, %v932
  %v936 = vmul.f32 %v935, %v934
  %v937 = vmul.f32 0.5, %v936
  %v938 = vsub.f32 1.5, %v937
  %v939 = vmul.f32 %v934, %v938
  %vm940 = vweird.f32 %v932
  %vm941 = vweird.f32 %v934
  %vm942 = vmor %vm940, %vm941
  %v943 = vsel %vm942, %v934, %v939
  %v944 = vrsqrt.pop %v933
  %v945 = vmul.f32 %v944, %v933
  %v946 = vmul.f32 %v945, %v944
  %v947 = vmul.f32 0.5, %v946
  %v948 = vsub.f32 1.5, %v947
  %v949 = vmul.f32 %v944, %v948
  %vm950 = vweird.f32 %v933
  %vm951 = vweird.f32 %v944
  %vm952 = vmor %vm950, %vm951
  %v953 = vsel %vm952, %v944, %v949
  %v954 = vmul.f32 %v920, %v943
  %v955 = vmul.f32 %v921, %v953
  %v957 = vperm.slane %v910, 0
  %v959 = vmul.f32 %v954, %v957
  %v960 = vmul.f32 %v955, %v957
  %v962 = vperm.slane %v911, 0
  %v964 = vadd.f32 %v959, %v962
  %v965 = vadd.f32 %v960, %v962
  %s966 = scalar_lea.vmem %s4, 32
  %v967 = vld [vmem:[%s966] sm:$0xff]
  %v968 = vld [vmem:[%s966 + $0x8] sm:$0xff]
  %v969 = vld [vmem:[%s966 + $0x10] sm:$0xff]
  %v970 = vld [vmem:[%s966 + $0x18] sm:$0xff]
  %s971 = scalar_lea.vmem %s5, 1
  %v972 = vld [vmem:[%s971] sm:$0x1]
  %v974 = vperm.slane %v972, 0
  %v977 = vsel %vm63, %v964, 0
  %v980 = vsel %vm63, %v965, 0
  %982 = vmatpush.msra.mxu0 0.0
  %983 = vmatpush.msra.mxu0 0.0
  %984 = vmatpush.msra.mxu0 0.0
  %985 = vmatpush.msra.mxu0 0.0
  %986 = vmatpush.msra.mxu0 0.0
  %987 = vmatpush.msra.mxu0 0.0
  %988 = vmatpush.msra.mxu0 0.0
  %989 = vmatpush.msra.mxu0 0.0
  %990 = vmatpush.msra.mxu0 0.0
  %991 = vmatpush.msra.mxu0 0.0
  %992 = vmatpush.msra.mxu0 0.0
  %993 = vmatpush.msra.mxu0 0.0
  %994 = vmatpush.msra.mxu0 %v970
  %995 = vmatpush.msra.mxu0 %v969
  %996 = vmatpush.msra.mxu0 %v968
  %997 = vmatpush.msra.mxu0 %v967
  %998 = vmatmul.f32.gmra.mxu0 %v977
  %v999 = vpop.f32.mrf.mxu0
  %v1000 = vadd.f32 %v974, %v999
  %1001 = vmatmul.f32.gmra.mxu0 %v980
  %v1002 = vpop.f32.mrf.mxu0
  %v1003 = vadd.f32 %v974, %v1002
  %1004 = vdwg.mxu0
  %1006 = vrot.lane.b32.xlu0 %v1000, 120
  %v1007 = vpop.permute.xlu0 %1006
  %1008 = vrot.lane.b32.xlu0 %v1000, 112
  %v1009 = vpop.permute.xlu0 %1008
  %1010 = vrot.lane.b32.xlu0 %v1000, 104
  %v1011 = vpop.permute.xlu0 %1010
  %1012 = vrot.lane.b32.xlu0 %v1000, 96
  %v1013 = vpop.permute.xlu0 %1012
  %v1014 = vsel %vm173, %v1000, 0
  %v1016 = vsel %vm173, %v1013, 0
  %1018 = vmatpush.xpose.msra.mxu0 0.0
  %1019 = vmatpush.xpose.msra.mxu0 0.0
  %1020 = vmatpush.xpose.msra.mxu0 0.0
  %1021 = vmatpush.xpose.msra.mxu0 0.0
  %1022 = vmatpush.xpose.msra.mxu0 0.0
  %1023 = vmatpush.xpose.msra.mxu0 0.0
  %1024 = vmatpush.xpose.msra.mxu0 0.0
  %1025 = vmatpush.xpose.msra.mxu0 0.0
  %1026 = vmatpush.xpose.msra.mxu0 0.0
  %1027 = vmatpush.xpose.msra.mxu0 0.0
  %1028 = vmatpush.xpose.msra.mxu0 0.0
  %1029 = vmatpush.xpose.msra.mxu0 0.0
  %1030 = vmatpush.xpose.msra.mxu0 0.0
  %1031 = vmatpush.xpose.msra.mxu0 0.0
  %1032 = vmatpush.xpose.msra.mxu0 0.0
  %1033 = vmatpush.xpose.msra.mxu0 %v1016
  %1034 = vmatmul.f32.gmra.mxu0 %v1014
  %v1035 = vpop.f32.mrf.mxu0
  %v1036 = vadd.f32 %v170, %v1035
  %1037 = vdwg.mxu0
  %1038 = vrot.lane.b32.xlu0 %v1007, 96
  %v1039 = vpop.permute.xlu0 %1038
  %v1040 = vsel %vm173, %v1007, 0
  %v1042 = vsel %vm173, %v1039, 0
  %1044 = vmatpush.xpose.msra.mxu0 0.0
  %1045 = vmatpush.xpose.msra.mxu0 0.0
  %1046 = vmatpush.xpose.msra.mxu0 0.0
  %1047 = vmatpush.xpose.msra.mxu0 0.0
  %1048 = vmatpush.xpose.msra.mxu0 0.0
  %1049 = vmatpush.xpose.msra.mxu0 0.0
  %1050 = vmatpush.xpose.msra.mxu0 0.0
  %1051 = vmatpush.xpose.msra.mxu0 0.0
  %1052 = vmatpush.xpose.msra.mxu0 0.0
  %1053 = vmatpush.xpose.msra.mxu0 0.0
  %1054 = vmatpush.xpose.msra.mxu0 0.0
  %1055 = vmatpush.xpose.msra.mxu0 0.0
  %1056 = vmatpush.xpose.msra.mxu0 0.0
  %1057 = vmatpush.xpose.msra.mxu0 0.0
  %1058 = vmatpush.xpose.msra.mxu0 0.0
  %1059 = vmatpush.xpose.msra.mxu0 %v1042
  %1060 = vmatmul.f32.gmra.mxu0 %v1040
  %v1061 = vpop.f32.mrf.mxu0
  %v1062 = vadd.f32 %v170, %v1061
  %1063 = vdwg.mxu0
  %1064 = vrot.lane.b32.xlu0 %v1009, 96
  %v1065 = vpop.permute.xlu0 %1064
  %v1066 = vsel %vm173, %v1009, 0
  %v1068 = vsel %vm173, %v1065, 0
  %1070 = vmatpush.xpose.msra.mxu0 0.0
  %1071 = vmatpush.xpose.msra.mxu0 0.0
  %1072 = vmatpush.xpose.msra.mxu0 0.0
  %1073 = vmatpush.xpose.msra.mxu0 0.0
  %1074 = vmatpush.xpose.msra.mxu0 0.0
  %1075 = vmatpush.xpose.msra.mxu0 0.0
  %1076 = vmatpush.xpose.msra.mxu0 0.0
  %1077 = vmatpush.xpose.msra.mxu0 0.0
  %1078 = vmatpush.xpose.msra.mxu0 0.0
  %1079 = vmatpush.xpose.msra.mxu0 0.0
  %1080 = vmatpush.xpose.msra.mxu0 0.0
  %1081 = vmatpush.xpose.msra.mxu0 0.0
  %1082 = vmatpush.xpose.msra.mxu0 0.0
  %1083 = vmatpush.xpose.msra.mxu0 0.0
  %1084 = vmatpush.xpose.msra.mxu0 0.0
  %1085 = vmatpush.xpose.msra.mxu0 %v1068
  %1086 = vmatmul.f32.gmra.mxu0 %v1066
  %v1087 = vpop.f32.mrf.mxu0
  %v1088 = vadd.f32 %v170, %v1087
  %1089 = vdwg.mxu0
  %1090 = vrot.lane.b32.xlu0 %v1011, 96
  %v1091 = vpop.permute.xlu0 %1090
  %v1092 = vsel %vm173, %v1011, 0
  %v1094 = vsel %vm173, %v1091, 0
  %1096 = vmatpush.xpose.msra.mxu0 0.0
  %1097 = vmatpush.xpose.msra.mxu0 0.0
  %1098 = vmatpush.xpose.msra.mxu0 0.0
  %1099 = vmatpush.xpose.msra.mxu0 0.0
  %1100 = vmatpush.xpose.msra.mxu0 0.0
  %1101 = vmatpush.xpose.msra.mxu0 0.0
  %1102 = vmatpush.xpose.msra.mxu0 0.0
  %1103 = vmatpush.xpose.msra.mxu0 0.0
  %1104 = vmatpush.xpose.msra.mxu0 0.0
  %1105 = vmatpush.xpose.msra.mxu0 0.0
  %1106 = vmatpush.xpose.msra.mxu0 0.0
  %1107 = vmatpush.xpose.msra.mxu0 0.0
  %1108 = vmatpush.xpose.msra.mxu0 0.0
  %1109 = vmatpush.xpose.msra.mxu0 0.0
  %1110 = vmatpush.xpose.msra.mxu0 0.0
  %1111 = vmatpush.xpose.msra.mxu0 %v1094
  %1112 = vmatmul.f32.gmra.mxu0 %v1092
  %v1113 = vpop.f32.mrf.mxu0
  %v1114 = vadd.f32 %v170, %v1113
  %1115 = vdwg.mxu0
  %v1116 = vsel %vm173, %v1036, -inf
  %1117 = vmax.xlane.f32.xlu0 %v1116
  %v1118 = vpop.xlane.xlu0 %1117
  %v1119 = vsel %vm173, %v1062, -inf
  %1120 = vmax.xlane.f32.xlu0 %v1119
  %v1121 = vpop.xlane.xlu0 %1120
  %v1122 = vsel %vm173, %v1088, -inf
  %1123 = vmax.xlane.f32.xlu0 %v1122
  %v1124 = vpop.xlane.xlu0 %1123
  %v1125 = vsel %vm173, %v1114, -inf
  %1126 = vmax.xlane.f32.xlu0 %v1125
  %v1127 = vpop.xlane.xlu0 %1126
  %v1128 = vsub.f32 %v1036, %v1118
  %v1129 = vsub.f32 %v1062, %v1121
  %v1130 = vsub.f32 %v1088, %v1124
  %v1131 = vsub.f32 %v1114, %v1127
  %v1132 = vmul.f32 %v1128, 1.442695
  %v1133 = vpow.pop %v1132
  %v1134 = vmul.f32 %v1129, 1.442695
  %v1135 = vpow.pop %v1134
  %v1136 = vmul.f32 %v1130, 1.442695
  %v1137 = vpow.pop %v1136
  %v1138 = vmul.f32 %v1131, 1.442695
  %v1139 = vpow.pop %v1138
  %v1140 = vsel %vm173, %v1133, 0.0
  %1141 = vadd.xlane.f32.xlu0 %v1140
  %v1142 = vpop.xlane.xlu0 %1141
  %v1143 = vsel %vm173, %v1135, 0.0
  %1144 = vadd.xlane.f32.xlu0 %v1143
  %v1145 = vpop.xlane.xlu0 %1144
  %v1146 = vsel %vm173, %v1137, 0.0
  %1147 = vadd.xlane.f32.xlu0 %v1146
  %v1148 = vpop.xlane.xlu0 %1147
  %v1149 = vsel %vm173, %v1139, 0.0
  %1150 = vadd.xlane.f32.xlu0 %v1149
  %v1151 = vpop.xlane.xlu0 %1150
  %v1152 = vrcp.pop %v1142
  %v1153 = vrcp.pop %v1145
  %v1154 = vrcp.pop %v1148
  %v1155 = vrcp.pop %v1151
  %v1156 = vmul.f32 %v1133, %v1152
  %v1157 = vmul.f32 %v1135, %v1153
  %v1158 = vmul.f32 %v1137, %v1154
  %v1159 = vmul.f32 %v1139, %v1155
  %1160 = vrot.lane.b32.xlu0 %v1000, 64
  %v1161 = vpop.permute.xlu0 %1160
  %v1164 = vsel %vm173, %v1156, 0
  %1166 = vmatpush.msra.mxu0 0.0
  %1167 = vmatpush.msra.mxu0 0.0
  %1168 = vmatpush.msra.mxu0 0.0
  %1169 = vmatpush.msra.mxu0 0.0
  %1170 = vmatpush.msra.mxu0 0.0
  %1171 = vmatpush.msra.mxu0 0.0
  %1172 = vmatpush.msra.mxu0 0.0
  %1173 = vmatpush.msra.mxu0 0.0
  %1174 = vmatpush.msra.mxu0 0.0
  %1175 = vmatpush.msra.mxu0 0.0
  %1176 = vmatpush.msra.mxu0 0.0
  %1177 = vmatpush.msra.mxu0 0.0
  %1178 = vmatpush.msra.mxu0 0.0
  %1179 = vmatpush.msra.mxu0 0.0
  %1180 = vmatpush.msra.mxu0 0.0
  %1181 = vmatpush.msra.mxu0 %v1161
  %1182 = vmatmul.f32.gmra.mxu0 %v1164
  %v1183 = vpop.f32.mrf.mxu0
  %v1184 = vadd.f32 0.0, %v1183
  %1185 = vdwg.mxu0
  %1186 = vrot.lane.b32.xlu0 %v1007, 64
  %v1187 = vpop.permute.xlu0 %1186
  %v1190 = vsel %vm173, %v1157, 0
  %1192 = vmatpush.msra.mxu0 0.0
  %1193 = vmatpush.msra.mxu0 0.0
  %1194 = vmatpush.msra.mxu0 0.0
  %1195 = vmatpush.msra.mxu0 0.0
  %1196 = vmatpush.msra.mxu0 0.0
  %1197 = vmatpush.msra.mxu0 0.0
  %1198 = vmatpush.msra.mxu0 0.0
  %1199 = vmatpush.msra.mxu0 0.0
  %1200 = vmatpush.msra.mxu0 0.0
  %1201 = vmatpush.msra.mxu0 0.0
  %1202 = vmatpush.msra.mxu0 0.0
  %1203 = vmatpush.msra.mxu0 0.0
  %1204 = vmatpush.msra.mxu0 0.0
  %1205 = vmatpush.msra.mxu0 0.0
  %1206 = vmatpush.msra.mxu0 0.0
  %1207 = vmatpush.msra.mxu0 %v1187
  %1208 = vmatmul.f32.gmra.mxu0 %v1190
  %v1209 = vpop.f32.mrf.mxu0
  %v1210 = vadd.f32 0.0, %v1209
  %1211 = vdwg.mxu0
  %1212 = vrot.lane.b32.xlu0 %v1009, 64
  %v1213 = vpop.permute.xlu0 %1212
  %v1216 = vsel %vm173, %v1158, 0
  %1218 = vmatpush.msra.mxu0 0.0
  %1219 = vmatpush.msra.mxu0 0.0
  %1220 = vmatpush.msra.mxu0 0.0
  %1221 = vmatpush.msra.mxu0 0.0
  %1222 = vmatpush.msra.mxu0 0.0
  %1223 = vmatpush.msra.mxu0 0.0
  %1224 = vmatpush.msra.mxu0 0.0
  %1225 = vmatpush.msra.mxu0 0.0
  %1226 = vmatpush.msra.mxu0 0.0
  %1227 = vmatpush.msra.mxu0 0.0
  %1228 = vmatpush.msra.mxu0 0.0
  %1229 = vmatpush.msra.mxu0 0.0
  %1230 = vmatpush.msra.mxu0 0.0
  %1231 = vmatpush.msra.mxu0 0.0
  %1232 = vmatpush.msra.mxu0 0.0
  %1233 = vmatpush.msra.mxu0 %v1213
  %1234 = vmatmul.f32.gmra.mxu0 %v1216
  %v1235 = vpop.f32.mrf.mxu0
  %v1236 = vadd.f32 0.0, %v1235
  %1237 = vdwg.mxu0
  %1238 = vrot.lane.b32.xlu0 %v1011, 64
  %v1239 = vpop.permute.xlu0 %1238
  %v1242 = vsel %vm173, %v1159, 0
  %1244 = vmatpush.msra.mxu0 0.0
  %1245 = vmatpush.msra.mxu0 0.0
  %1246 = vmatpush.msra.mxu0 0.0
  %1247 = vmatpush.msra.mxu0 0.0
  %1248 = vmatpush.msra.mxu0 0.0
  %1249 = vmatpush.msra.mxu0 0.0
  %1250 = vmatpush.msra.mxu0 0.0
  %1251 = vmatpush.msra.mxu0 0.0
  %1252 = vmatpush.msra.mxu0 0.0
  %1253 = vmatpush.msra.mxu0 0.0
  %1254 = vmatpush.msra.mxu0 0.0
  %1255 = vmatpush.msra.mxu0 0.0
  %1256 = vmatpush.msra.mxu0 0.0
  %1257 = vmatpush.msra.mxu0 0.0
  %1258 = vmatpush.msra.mxu0 0.0
  %1259 = vmatpush.msra.mxu0 %v1239
  %1260 = vmatmul.f32.gmra.mxu0 %v1242
  %v1261 = vpop.f32.mrf.mxu0
  %v1262 = vadd.f32 0.0, %v1261
  %1263 = vdwg.mxu0
  %1265 = vrot.lane.b32.xlu0 %v1210, 8
  %v1266 = vpop.permute.xlu0 %1265
  %1269 = vrot.lane.b32.xlu0 %v1236, 16
  %v1270 = vpop.permute.xlu0 %1269
  %1273 = vrot.lane.b32.xlu0 %v1262, 24
  %v1274 = vpop.permute.xlu0 %1273
  %v1276 = vsel %vm173, %v1184, %v1266
  %v1277 = vsel %vm437, %v1276, %v1270
  %v1278 = vsel %vm439, %v1277, %v1274
  %1280 = vrot.lane.b32.xlu0 %v1003, 120
  %v1281 = vpop.permute.xlu0 %1280
  %1282 = vrot.lane.b32.xlu0 %v1003, 112
  %v1283 = vpop.permute.xlu0 %1282
  %1284 = vrot.lane.b32.xlu0 %v1003, 104
  %v1285 = vpop.permute.xlu0 %1284
  %1286 = vrot.lane.b32.xlu0 %v1003, 96
  %v1287 = vpop.permute.xlu0 %1286
  %v1288 = vsel %vm173, %v1003, 0
  %v1290 = vsel %vm173, %v1287, 0
  %1292 = vmatpush.xpose.msra.mxu0 0.0
  %1293 = vmatpush.xpose.msra.mxu0 0.0
  %1294 = vmatpush.xpose.msra.mxu0 0.0
  %1295 = vmatpush.xpose.msra.mxu0 0.0
  %1296 = vmatpush.xpose.msra.mxu0 0.0
  %1297 = vmatpush.xpose.msra.mxu0 0.0
  %1298 = vmatpush.xpose.msra.mxu0 0.0
  %1299 = vmatpush.xpose.msra.mxu0 0.0
  %1300 = vmatpush.xpose.msra.mxu0 0.0
  %1301 = vmatpush.xpose.msra.mxu0 0.0
  %1302 = vmatpush.xpose.msra.mxu0 0.0
  %1303 = vmatpush.xpose.msra.mxu0 0.0
  %1304 = vmatpush.xpose.msra.mxu0 0.0
  %1305 = vmatpush.xpose.msra.mxu0 0.0
  %1306 = vmatpush.xpose.msra.mxu0 0.0
  %1307 = vmatpush.xpose.msra.mxu0 %v1290
  %1308 = vmatmul.f32.gmra.mxu0 %v1288
  %v1309 = vpop.f32.mrf.mxu0
  %v1310 = vadd.f32 %v448, %v1309
  %1311 = vdwg.mxu0
  %1312 = vrot.lane.b32.xlu0 %v1281, 96
  %v1313 = vpop.permute.xlu0 %1312
  %v1314 = vsel %vm173, %v1281, 0
  %v1316 = vsel %vm173, %v1313, 0
  %1318 = vmatpush.xpose.msra.mxu0 0.0
  %1319 = vmatpush.xpose.msra.mxu0 0.0
  %1320 = vmatpush.xpose.msra.mxu0 0.0
  %1321 = vmatpush.xpose.msra.mxu0 0.0
  %1322 = vmatpush.xpose.msra.mxu0 0.0
  %1323 = vmatpush.xpose.msra.mxu0 0.0
  %1324 = vmatpush.xpose.msra.mxu0 0.0
  %1325 = vmatpush.xpose.msra.mxu0 0.0
  %1326 = vmatpush.xpose.msra.mxu0 0.0
  %1327 = vmatpush.xpose.msra.mxu0 0.0
  %1328 = vmatpush.xpose.msra.mxu0 0.0
  %1329 = vmatpush.xpose.msra.mxu0 0.0
  %1330 = vmatpush.xpose.msra.mxu0 0.0
  %1331 = vmatpush.xpose.msra.mxu0 0.0
  %1332 = vmatpush.xpose.msra.mxu0 0.0
  %1333 = vmatpush.xpose.msra.mxu0 %v1316
  %1334 = vmatmul.f32.gmra.mxu0 %v1314
  %v1335 = vpop.f32.mrf.mxu0
  %v1336 = vadd.f32 %v448, %v1335
  %1337 = vdwg.mxu0
  %1338 = vrot.lane.b32.xlu0 %v1283, 96
  %v1339 = vpop.permute.xlu0 %1338
  %v1340 = vsel %vm173, %v1283, 0
  %v1342 = vsel %vm173, %v1339, 0
  %1344 = vmatpush.xpose.msra.mxu0 0.0
  %1345 = vmatpush.xpose.msra.mxu0 0.0
  %1346 = vmatpush.xpose.msra.mxu0 0.0
  %1347 = vmatpush.xpose.msra.mxu0 0.0
  %1348 = vmatpush.xpose.msra.mxu0 0.0
  %1349 = vmatpush.xpose.msra.mxu0 0.0
  %1350 = vmatpush.xpose.msra.mxu0 0.0
  %1351 = vmatpush.xpose.msra.mxu0 0.0
  %1352 = vmatpush.xpose.msra.mxu0 0.0
  %1353 = vmatpush.xpose.msra.mxu0 0.0
  %1354 = vmatpush.xpose.msra.mxu0 0.0
  %1355 = vmatpush.xpose.msra.mxu0 0.0
  %1356 = vmatpush.xpose.msra.mxu0 0.0
  %1357 = vmatpush.xpose.msra.mxu0 0.0
  %1358 = vmatpush.xpose.msra.mxu0 0.0
  %1359 = vmatpush.xpose.msra.mxu0 %v1342
  %1360 = vmatmul.f32.gmra.mxu0 %v1340
  %v1361 = vpop.f32.mrf.mxu0
  %v1362 = vadd.f32 %v448, %v1361
  %1363 = vdwg.mxu0
  %1364 = vrot.lane.b32.xlu0 %v1285, 96
  %v1365 = vpop.permute.xlu0 %1364
  %v1366 = vsel %vm173, %v1285, 0
  %v1368 = vsel %vm173, %v1365, 0
  %1370 = vmatpush.xpose.msra.mxu0 0.0
  %1371 = vmatpush.xpose.msra.mxu0 0.0
  %1372 = vmatpush.xpose.msra.mxu0 0.0
  %1373 = vmatpush.xpose.msra.mxu0 0.0
  %1374 = vmatpush.xpose.msra.mxu0 0.0
  %1375 = vmatpush.xpose.msra.mxu0 0.0
  %1376 = vmatpush.xpose.msra.mxu0 0.0
  %1377 = vmatpush.xpose.msra.mxu0 0.0
  %1378 = vmatpush.xpose.msra.mxu0 0.0
  %1379 = vmatpush.xpose.msra.mxu0 0.0
  %1380 = vmatpush.xpose.msra.mxu0 0.0
  %1381 = vmatpush.xpose.msra.mxu0 0.0
  %1382 = vmatpush.xpose.msra.mxu0 0.0
  %1383 = vmatpush.xpose.msra.mxu0 0.0
  %1384 = vmatpush.xpose.msra.mxu0 0.0
  %1385 = vmatpush.xpose.msra.mxu0 %v1368
  %1386 = vmatmul.f32.gmra.mxu0 %v1366
  %v1387 = vpop.f32.mrf.mxu0
  %v1388 = vadd.f32 %v448, %v1387
  %1389 = vdwg.mxu0
  %v1390 = vsel %vm173, %v1310, -inf
  %1391 = vmax.xlane.f32.xlu0 %v1390
  %v1392 = vpop.xlane.xlu0 %1391
  %v1393 = vsel %vm173, %v1336, -inf
  %1394 = vmax.xlane.f32.xlu0 %v1393
  %v1395 = vpop.xlane.xlu0 %1394
  %v1396 = vsel %vm173, %v1362, -inf
  %1397 = vmax.xlane.f32.xlu0 %v1396
  %v1398 = vpop.xlane.xlu0 %1397
  %v1399 = vsel %vm173, %v1388, -inf
  %1400 = vmax.xlane.f32.xlu0 %v1399
  %v1401 = vpop.xlane.xlu0 %1400
  %v1402 = vsub.f32 %v1310, %v1392
  %v1403 = vsub.f32 %v1336, %v1395
  %v1404 = vsub.f32 %v1362, %v1398
  %v1405 = vsub.f32 %v1388, %v1401
  %v1406 = vmul.f32 %v1402, 1.442695
  %v1407 = vpow.pop %v1406
  %v1408 = vmul.f32 %v1403, 1.442695
  %v1409 = vpow.pop %v1408
  %v1410 = vmul.f32 %v1404, 1.442695
  %v1411 = vpow.pop %v1410
  %v1412 = vmul.f32 %v1405, 1.442695
  %v1413 = vpow.pop %v1412
  %v1414 = vsel %vm173, %v1407, 0.0
  %1415 = vadd.xlane.f32.xlu0 %v1414
  %v1416 = vpop.xlane.xlu0 %1415
  %v1417 = vsel %vm173, %v1409, 0.0
  %1418 = vadd.xlane.f32.xlu0 %v1417
  %v1419 = vpop.xlane.xlu0 %1418
  %v1420 = vsel %vm173, %v1411, 0.0
  %1421 = vadd.xlane.f32.xlu0 %v1420
  %v1422 = vpop.xlane.xlu0 %1421
  %v1423 = vsel %vm173, %v1413, 0.0
  %1424 = vadd.xlane.f32.xlu0 %v1423
  %v1425 = vpop.xlane.xlu0 %1424
  %v1426 = vrcp.pop %v1416
  %v1427 = vrcp.pop %v1419
  %v1428 = vrcp.pop %v1422
  %v1429 = vrcp.pop %v1425
  %v1430 = vmul.f32 %v1407, %v1426
  %v1431 = vmul.f32 %v1409, %v1427
  %v1432 = vmul.f32 %v1411, %v1428
  %v1433 = vmul.f32 %v1413, %v1429
  %1434 = vrot.lane.b32.xlu0 %v1003, 64
  %v1435 = vpop.permute.xlu0 %1434
  %v1438 = vsel %vm173, %v1430, 0
  %1440 = vmatpush.msra.mxu0 0.0
  %1441 = vmatpush.msra.mxu0 0.0
  %1442 = vmatpush.msra.mxu0 0.0
  %1443 = vmatpush.msra.mxu0 0.0
  %1444 = vmatpush.msra.mxu0 0.0
  %1445 = vmatpush.msra.mxu0 0.0
  %1446 = vmatpush.msra.mxu0 0.0
  %1447 = vmatpush.msra.mxu0 0.0
  %1448 = vmatpush.msra.mxu0 0.0
  %1449 = vmatpush.msra.mxu0 0.0
  %1450 = vmatpush.msra.mxu0 0.0
  %1451 = vmatpush.msra.mxu0 0.0
  %1452 = vmatpush.msra.mxu0 0.0
  %1453 = vmatpush.msra.mxu0 0.0
  %1454 = vmatpush.msra.mxu0 0.0
  %1455 = vmatpush.msra.mxu0 %v1435
  %1456 = vmatmul.f32.gmra.mxu0 %v1438
  %v1457 = vpop.f32.mrf.mxu0
  %v1458 = vadd.f32 0.0, %v1457
  %1459 = vdwg.mxu0
  %1460 = vrot.lane.b32.xlu0 %v1281, 64
  %v1461 = vpop.permute.xlu0 %1460
  %v1464 = vsel %vm173, %v1431, 0
  %1466 = vmatpush.msra.mxu0 0.0
  %1467 = vmatpush.msra.mxu0 0.0
  %1468 = vmatpush.msra.mxu0 0.0
  %1469 = vmatpush.msra.mxu0 0.0
  %1470 = vmatpush.msra.mxu0 0.0
  %1471 = vmatpush.msra.mxu0 0.0
  %1472 = vmatpush.msra.mxu0 0.0
  %1473 = vmatpush.msra.mxu0 0.0
  %1474 = vmatpush.msra.mxu0 0.0
  %1475 = vmatpush.msra.mxu0 0.0
  %1476 = vmatpush.msra.mxu0 0.0
  %1477 = vmatpush.msra.mxu0 0.0
  %1478 = vmatpush.msra.mxu0 0.0
  %1479 = vmatpush.msra.mxu0 0.0
  %1480 = vmatpush.msra.mxu0 0.0
  %1481 = vmatpush.msra.mxu0 %v1461
  %1482 = vmatmul.f32.gmra.mxu0 %v1464
  %v1483 = vpop.f32.mrf.mxu0
  %v1484 = vadd.f32 0.0, %v1483
  %1485 = vdwg.mxu0
  %1486 = vrot.lane.b32.xlu0 %v1283, 64
  %v1487 = vpop.permute.xlu0 %1486
  %v1490 = vsel %vm173, %v1432, 0
  %1492 = vmatpush.msra.mxu0 0.0
  %1493 = vmatpush.msra.mxu0 0.0
  %1494 = vmatpush.msra.mxu0 0.0
  %1495 = vmatpush.msra.mxu0 0.0
  %1496 = vmatpush.msra.mxu0 0.0
  %1497 = vmatpush.msra.mxu0 0.0
  %1498 = vmatpush.msra.mxu0 0.0
  %1499 = vmatpush.msra.mxu0 0.0
  %1500 = vmatpush.msra.mxu0 0.0
  %1501 = vmatpush.msra.mxu0 0.0
  %1502 = vmatpush.msra.mxu0 0.0
  %1503 = vmatpush.msra.mxu0 0.0
  %1504 = vmatpush.msra.mxu0 0.0
  %1505 = vmatpush.msra.mxu0 0.0
  %1506 = vmatpush.msra.mxu0 0.0
  %1507 = vmatpush.msra.mxu0 %v1487
  %1508 = vmatmul.f32.gmra.mxu0 %v1490
  %v1509 = vpop.f32.mrf.mxu0
  %v1510 = vadd.f32 0.0, %v1509
  %1511 = vdwg.mxu0
  %1512 = vrot.lane.b32.xlu0 %v1285, 64
  %v1513 = vpop.permute.xlu0 %1512
  %v1516 = vsel %vm173, %v1433, 0
  %1518 = vmatpush.msra.mxu0 0.0
  %1519 = vmatpush.msra.mxu0 0.0
  %1520 = vmatpush.msra.mxu0 0.0
  %1521 = vmatpush.msra.mxu0 0.0
  %1522 = vmatpush.msra.mxu0 0.0
  %1523 = vmatpush.msra.mxu0 0.0
  %1524 = vmatpush.msra.mxu0 0.0
  %1525 = vmatpush.msra.mxu0 0.0
  %1526 = vmatpush.msra.mxu0 0.0
  %1527 = vmatpush.msra.mxu0 0.0
  %1528 = vmatpush.msra.mxu0 0.0
  %1529 = vmatpush.msra.mxu0 0.0
  %1530 = vmatpush.msra.mxu0 0.0
  %1531 = vmatpush.msra.mxu0 0.0
  %1532 = vmatpush.msra.mxu0 0.0
  %1533 = vmatpush.msra.mxu0 %v1513
  %1534 = vmatmul.f32.gmra.mxu0 %v1516
  %v1535 = vpop.f32.mrf.mxu0
  %v1536 = vadd.f32 0.0, %v1535
  %1537 = vdwg.mxu0
  %1539 = vrot.lane.b32.xlu0 %v1484, 8
  %v1540 = vpop.permute.xlu0 %1539
  %1543 = vrot.lane.b32.xlu0 %v1510, 16
  %v1544 = vpop.permute.xlu0 %1543
  %1547 = vrot.lane.b32.xlu0 %v1536, 24
  %v1548 = vpop.permute.xlu0 %1547
  %v1550 = vsel %vm173, %v1458, %v1540
  %v1551 = vsel %vm437, %v1550, %v1544
  %v1552 = vsel %vm439, %v1551, %v1548
  %s1553 = scalar_lea.vmem %s6, 32
  %v1554 = vld [vmem:[%s1553] sm:$0xff]
  %v1555 = vld [vmem:[%s1553 + $0x8] sm:$0xff]
  %v1556 = vld [vmem:[%s1553 + $0x10] sm:$0xff]
  %v1557 = vld [vmem:[%s1553 + $0x18] sm:$0xff]
  %s1558 = scalar_lea.vmem %s7, 1
  %v1559 = vld [vmem:[%s1558] sm:$0x1]
  %v1561 = vperm.slane %v1559, 0
  %v1564 = vsel %vm63, %v1278, 0
  %v1567 = vsel %vm63, %v1552, 0
  %1569 = vmatpush.msra.mxu0 0.0
  %1570 = vmatpush.msra.mxu0 0.0
  %1571 = vmatpush.msra.mxu0 0.0
  %1572 = vmatpush.msra.mxu0 0.0
  %1573 = vmatpush.msra.mxu0 0.0
  %1574 = vmatpush.msra.mxu0 0.0
  %1575 = vmatpush.msra.mxu0 0.0
  %1576 = vmatpush.msra.mxu0 0.0
  %1577 = vmatpush.msra.mxu0 0.0
  %1578 = vmatpush.msra.mxu0 0.0
  %1579 = vmatpush.msra.mxu0 0.0
  %1580 = vmatpush.msra.mxu0 0.0
  %1581 = vmatpush.msra.mxu0 %v1557
  %1582 = vmatpush.msra.mxu0 %v1556
  %1583 = vmatpush.msra.mxu0 %v1555
  %1584 = vmatpush.msra.mxu0 %v1554
  %1585 = vmatmul.f32.gmra.mxu0 %v1564
  %v1586 = vpop.f32.mrf.mxu0
  %v1587 = vadd.f32 %v1561, %v1586
  %1588 = vmatmul.f32.gmra.mxu0 %v1567
  %v1589 = vpop.f32.mrf.mxu0
  %v1590 = vadd.f32 %v1561, %v1589
  %1591 = vdwg.mxu0
  %v1592 = vadd.f32 %v964, %v1587
  %v1593 = vadd.f32 %v965, %v1590
  %s1594 = scalar_lea.vmem %s8, 1
  %v1595 = vld [vmem:[%s1594] sm:$0x1]
  %s1596 = scalar_lea.vmem %s9, 1
  %v1597 = vld [vmem:[%s1596] sm:$0x1]
  %v1598 = vsel %vm63, %v1592, 0.0
  %1599 = vadd.xlane.f32.xlu0 %v1598
  %v1600 = vpop.xlane.xlu0 %1599
  %v1601 = vsel %vm63, %v1593, 0.0
  %1602 = vadd.xlane.f32.xlu0 %v1601
  %v1603 = vpop.xlane.xlu0 %1602
  %v1604 = vmul.f32 %v1600, %v76
  %v1605 = vmul.f32 %v1603, %v76
  %v1606 = vsub.f32 %v1592, %v1604
  %v1607 = vsub.f32 %v1593, %v1605
  %v1608 = vmul.f32 %v1606, %v1606
  %v1609 = vmul.f32 %v1607, %v1607
  %v1610 = vsel %vm63, %v1608, 0.0
  %1611 = vadd.xlane.f32.xlu0 %v1610
  %v1612 = vpop.xlane.xlu0 %1611
  %v1613 = vsel %vm63, %v1609, 0.0
  %1614 = vadd.xlane.f32.xlu0 %v1613
  %v1615 = vpop.xlane.xlu0 %1614
  %v1616 = vmul.f32 %v1612, %v76
  %v1617 = vmul.f32 %v1615, %v76
  %v1618 = vadd.f32 %v1616, 1e-12
  %v1619 = vadd.f32 %v1617, 1e-12
  %v1620 = vrsqrt.pop %v1618
  %v1621 = vmul.f32 %v1620, %v1618
  %v1622 = vmul.f32 %v1621, %v1620
  %v1623 = vmul.f32 0.5, %v1622
  %v1624 = vsub.f32 1.5, %v1623
  %v1625 = vmul.f32 %v1620, %v1624
  %vm1626 = vweird.f32 %v1618
  %vm1627 = vweird.f32 %v1620
  %vm1628 = vmor %vm1626, %vm1627
  %v1629 = vsel %vm1628, %v1620, %v1625
  %v1630 = vrsqrt.pop %v1619
  %v1631 = vmul.f32 %v1630, %v1619
  %v1632 = vmul.f32 %v1631, %v1630
  %v1633 = vmul.f32 0.5, %v1632
  %v1634 = vsub.f32 1.5, %v1633
  %v1635 = vmul.f32 %v1630, %v1634
  %vm1636 = vweird.f32 %v1619
  %vm1637 = vweird.f32 %v1630
  %vm1638 = vmor %vm1636, %vm1637
  %v1639 = vsel %vm1638, %v1630, %v1635
  %v1640 = vmul.f32 %v1606, %v1629
  %v1641 = vmul.f32 %v1607, %v1639
  %v1643 = vperm.slane %v1595, 0
  %v1645 = vmul.f32 %v1640, %v1643
  %v1646 = vmul.f32 %v1641, %v1643
  %v1648 = vperm.slane %v1597, 0
  %v1650 = vadd.f32 %v1645, %v1648
  %v1651 = vadd.f32 %v1646, %v1648
  %s1652 = scalar_lea.vmem %s10, 32
  %v1653 = vld [vmem:[%s1652] sm:$0xff]
  %v1654 = vld [vmem:[%s1652 + $0x8] sm:$0xff]
  %v1655 = vld [vmem:[%s1652 + $0x10] sm:$0xff]
  %v1656 = vld [vmem:[%s1652 + $0x18] sm:$0xff]
  %s1657 = scalar_lea.vmem %s11, 1
  %v1658 = vld [vmem:[%s1657] sm:$0x1]
  %v1660 = vperm.slane %v1658, 0
  %v1663 = vsel %vm63, %v1650, 0
  %v1666 = vsel %vm63, %v1651, 0
  %1668 = vmatpush.msra.mxu0 0.0
  %1669 = vmatpush.msra.mxu0 0.0
  %1670 = vmatpush.msra.mxu0 0.0
  %1671 = vmatpush.msra.mxu0 0.0
  %1672 = vmatpush.msra.mxu0 0.0
  %1673 = vmatpush.msra.mxu0 0.0
  %1674 = vmatpush.msra.mxu0 0.0
  %1675 = vmatpush.msra.mxu0 0.0
  %1676 = vmatpush.msra.mxu0 0.0
  %1677 = vmatpush.msra.mxu0 0.0
  %1678 = vmatpush.msra.mxu0 0.0
  %1679 = vmatpush.msra.mxu0 0.0
  %1680 = vmatpush.msra.mxu0 %v1656
  %1681 = vmatpush.msra.mxu0 %v1655
  %1682 = vmatpush.msra.mxu0 %v1654
  %1683 = vmatpush.msra.mxu0 %v1653
  %1684 = vmatmul.f32.gmra.mxu0 %v1663
  %v1685 = vpop.f32.mrf.mxu0
  %v1686 = vadd.f32 %v1660, %v1685
  %1687 = vmatmul.f32.gmra.mxu0 %v1666
  %v1688 = vpop.f32.mrf.mxu0
  %v1689 = vadd.f32 %v1660, %v1688
  %1690 = vdwg.mxu0
  %v1691 = vmul.f32 %v1686, %v1686
  %v1692 = vmul.f32 %v1689, %v1689
  %v1693 = vmul.f32 %v1686, %v1691
  %v1694 = vmul.f32 %v1689, %v1692
  %v1695 = vmul.f32 %v1693, 0.044715
  %v1696 = vmul.f32 %v1694, 0.044715
  %v1697 = vadd.f32 %v1686, %v1695
  %v1698 = vadd.f32 %v1689, %v1696
  %v1699 = vmul.f32 %v1697, 0.7978846
  %v1700 = vmul.f32 %v1698, 0.7978846
  %v1701 = vtanh.pop %v1699
  %v1702 = vtanh.pop %v1700
  %v1703 = vadd.f32 %v1701, 1.0
  %v1704 = vadd.f32 %v1702, 1.0
  %v1705 = vmul.f32 %v1703, 0.5
  %v1706 = vmul.f32 %v1704, 0.5
  %v1707 = vmul.f32 %v1686, %v1705
  %v1708 = vmul.f32 %v1689, %v1706
  %s1709 = scalar_lea.vmem %s12, 64
  %v1710 = vld [vmem:[%s1709] sm:$0xff]
  %v1711 = vld [vmem:[%s1709 + $0x8] sm:$0xff]
  %v1712 = vld [vmem:[%s1709 + $0x10] sm:$0xff]
  %v1713 = vld [vmem:[%s1709 + $0x18] sm:$0xff]
  %v1714 = vld [vmem:[%s1709 + $0x20] sm:$0xff]
  %v1715 = vld [vmem:[%s1709 + $0x28] sm:$0xff]
  %v1716 = vld [vmem:[%s1709 + $0x30] sm:$0xff]
  %v1717 = vld [vmem:[%s1709 + $0x38] sm:$0xff]
  %s1718 = scalar_lea.vmem %s13, 1
  %v1719 = vld [vmem:[%s1718] sm:$0x1]
  %v1721 = vperm.slane %v1719, 0
  %v1724 = vsel %vm878, %v1707, 0
  %v1727 = vsel %vm878, %v1708, 0
  %1729 = vmatpush.msra.mxu0 0.0
  %1730 = vmatpush.msra.mxu0 0.0
  %1731 = vmatpush.msra.mxu0 0.0
  %1732 = vmatpush.msra.mxu0 0.0
  %1733 = vmatpush.msra.mxu0 0.0
  %1734 = vmatpush.msra.mxu0 0.0
  %1735 = vmatpush.msra.mxu0 0.0
  %1736 = vmatpush.msra.mxu0 0.0
  %1737 = vmatpush.msra.mxu0 %v1717
  %1738 = vmatpush.msra.mxu0 %v1716
  %1739 = vmatpush.msra.mxu0 %v1715
  %1740 = vmatpush.msra.mxu0 %v1714
  %1741 = vmatpush.msra.mxu0 %v1713
  %1742 = vmatpush.msra.mxu0 %v1712
  %1743 = vmatpush.msra.mxu0 %v1711
  %1744 = vmatpush.msra.mxu0 %v1710
  %1745 = vmatmul.f32.gmra.mxu0 %v1724
  %v1746 = vpop.f32.mrf.mxu0
  %v1747 = vadd.f32 %v1721, %v1746
  %1748 = vmatmul.f32.gmra.mxu0 %v1727
  %v1749 = vpop.f32.mrf.mxu0
  %v1750 = vadd.f32 %v1721, %v1749
  %1751 = vdwg.mxu0
  %v1752 = vadd.f32 %v1650, %v1747
  %v1753 = vadd.f32 %v1651, %v1750
  %s1754 = scalar_lea.vmem %s14, 1
  %v1755 = vld [vmem:[%s1754] sm:$0x1]
  %s1756 = scalar_lea.vmem %s15, 1
  %v1757 = vld [vmem:[%s1756] sm:$0x1]
  %v1758 = vsel %vm63, %v1752, 0.0
  %1759 = vadd.xlane.f32.xlu0 %v1758
  %v1760 = vpop.xlane.xlu0 %1759
  %v1761 = vsel %vm63, %v1753, 0.0
  %1762 = vadd.xlane.f32.xlu0 %v1761
  %v1763 = vpop.xlane.xlu0 %1762
  %v1764 = vmul.f32 %v1760, %v76
  %v1765 = vmul.f32 %v1763, %v76
  %v1766 = vsub.f32 %v1752, %v1764
  %v1767 = vsub.f32 %v1753, %v1765
  %v1768 = vmul.f32 %v1766, %v1766
  %v1769 = vmul.f32 %v1767, %v1767
  %v1770 = vsel %vm63, %v1768, 0.0
  %1771 = vadd.xlane.f32.xlu0 %v1770
  %v1772 = vpop.xlane.xlu0 %1771
  %v1773 = vsel %vm63, %v1769, 0.0
  %1774 = vadd.xlane.f32.xlu0 %v1773
  %v1775 = vpop.xlane.xlu0 %1774
  %v1776 = vmul.f32 %v1772, %v76
  %v1777 = vmul.f32 %v1775, %v76
  %v1778 = vadd.f32 %v1776, 1e-12
  %v1779 = vadd.f32 %v1777, 1e-12
  %v1780 = vrsqrt.pop %v1778
  %v1781 = vmul.f32 %v1780, %v1778
  %v1782 = vmul.f32 %v1781, %v1780
  %v1783 = vmul.f32 0.5, %v1782
  %v1784 = vsub.f32 1.5, %v1783
  %v1785 = vmul.f32 %v1780, %v1784
  %vm1786 = vweird.f32 %v1778
  %vm1787 = vweird.f32 %v1780
  %vm1788 = vmor %vm1786, %vm1787
  %v1789 = vsel %vm1788, %v1780, %v1785
  %v1790 = vrsqrt.pop %v1779
  %v1791 = vmul.f32 %v1790, %v1779
  %v1792 = vmul.f32 %v1791, %v1790
  %v1793 = vmul.f32 0.5, %v1792
  %v1794 = vsub.f32 1.5, %v1793
  %v1795 = vmul.f32 %v1790, %v1794
  %vm1796 = vweird.f32 %v1779
  %vm1797 = vweird.f32 %v1790
  %vm1798 = vmor %vm1796, %vm1797
  %v1799 = vsel %vm1798, %v1790, %v1795
  %v1800 = vmul.f32 %v1766, %v1789
  %v1801 = vmul.f32 %v1767, %v1799
  %v1803 = vperm.slane %v1755, 0
  %v1805 = vmul.f32 %v1800, %v1803
  %v1806 = vmul.f32 %v1801, %v1803
  %v1808 = vperm.slane %v1757, 0
  %v1810 = vadd.f32 %v1805, %v1808
  %v1811 = vadd.f32 %v1806, %v1808
  %v1812 = vld [vmem:[%s16] sm:$0xff]
  %v1813 = vld [vmem:[%s16 + $0x8] sm:$0xff]
  %v1814 = vld [vmem:[%s16 + $0x10] sm:$0xff]
  %v1815 = vld [vmem:[%s16 + $0x18] sm:$0xff]
  %v1816 = vld [vmem:[%s17] sm:$0x1]
  %v1818 = vperm.slane %v1816, 0
  %v1821 = vsel %vm63, %v1810, 0
  %v1824 = vsel %vm63, %v1811, 0
  %1826 = vmatpush.msra.mxu0 0.0
  %1827 = vmatpush.msra.mxu0 0.0
  %1828 = vmatpush.msra.mxu0 0.0
  %1829 = vmatpush.msra.mxu0 0.0
  %1830 = vmatpush.msra.mxu0 0.0
  %1831 = vmatpush.msra.mxu0 0.0
  %1832 = vmatpush.msra.mxu0 0.0
  %1833 = vmatpush.msra.mxu0 0.0
  %1834 = vmatpush.msra.mxu0 0.0
  %1835 = vmatpush.msra.mxu0 0.0
  %1836 = vmatpush.msra.mxu0 0.0
  %1837 = vmatpush.msra.mxu0 0.0
  %1838 = vmatpush.msra.mxu0 %v1815
  %1839 = vmatpush.msra.mxu0 %v1814
  %1840 = vmatpush.msra.mxu0 %v1813
  %1841 = vmatpush.msra.mxu0 %v1812
  %1842 = vmatmul.f32.gmra.mxu0 %v1821
  %v1843 = vpop.f32.mrf.mxu0
  %v1844 = vadd.f32 %v1818, %v1843
  %1845 = vmatmul.f32.gmra.mxu0 %v1824
  %v1846 = vpop.f32.mrf.mxu0
  %v1847 = vadd.f32 %v1818, %v1846
  %1848 = vdwg.mxu0
  %1849 = vst [vmem:[%s18] sm:$0xff] %v1844
  %1850 = vst [vmem:[%s18 + $0x8] sm:$0xff] %v1847
  // Predicated region
  $region74: #{qa_forward.1} parent=0 // pred_check
    _
  $region75: #{qa_forward.1} parent=0 // pred_check_branch
    %1852 = sbr.rel (0) target = $region77
  $region76: #{qa_forward.1} parent=0 // pred_region
    _
  $region77: #{qa_forward.1} parent=0 // pred_fallthru
    _
  // Predicated region
  $region78: #{qa_forward.1} parent=0 // pred_check
    _
  $region79: #{qa_forward.1} parent=0 // pred_check_branch
    %1854 = sbr.rel (0) target = $region81
  $region80: #{qa_forward.1} parent=0 // pred_region
    _
  $region81: #{qa_forward.1} parent=0 // pred_fallthru
    _

</llo_original>
